<compile_context>
chip_gen: v6e
topology: v6e:2x2x1
jax: 0.10.0
libtpu: 0.0.40
codegen_flags: <defaults>
</compile_context>

<pallas_src>
import functools

import jax
import jax.numpy as jnp
from jax.experimental import pallas as pl
from jax.experimental.pallas import tpu as pltpu

# Small, self-consistent configuration (module constants scaled down for the test).
EMBEDDING_DIM = 128     # module uses 300
SEQ_LEN = 16            # module uses 300
HIDDEN_DIM = 32
TAGSET_SIZE = 20
BATCH = 8               # fills the 8 MXU sublanes of the recurrent matmul
VOCAB = 50


# ----------------------------------------------------------------------------
# Fused kernel: input projection prologue + LSTM recurrence + hidden2tag /
#               .view mean / log_softmax epilogue.  One invocation, no grid.
# ----------------------------------------------------------------------------
def lstm_fused_kernel(x_ref, wih_ref, b_ref, whh_ref, routing_ref, wtag_ref,
                      btag_ref, out_ref, gx_ref, hist_ref, *, seq_len, batch):
    H = whh_ref.shape[0]

    # ---- Prologue: full-sequence input projection into VMEM scratch. ----
    # One (S*B, E) @ (E, 4H) matmul; weights / gates stay resident in VMEM.
    gx_ref[...] = (jnp.dot(x_ref[...], wih_ref[...],
                           preferred_element_type=jnp.float32)
                   + b_ref[...])

    # Per-lane activation constants, hoisted out of the recurrence (broadcasts are
    # not CSE'd by JAX, so they must not live inside the step).  PyTorch gate order
    # is (i, f, g, o): lanes [2H, 3H) use tanh, the rest sigmoid, using
    # sigmoid(x) = 0.5 * tanh(0.5 * x) + 0.5  ->  one full-width tanh per step.
    lane = jax.lax.broadcasted_iota(jnp.int32, (1, 4 * H), 1)
    is_g = jnp.logical_and(lane >= 2 * H, lane < 3 * H)
    scale = jnp.where(is_g, 1.0, 0.5).astype(jnp.float32)
    offset = jnp.where(is_g, 0.0, 0.5).astype(jnp.float32)

    def step(t, carry):
        h, c = carry
        row = t * batch
        if batch % 8 == 0:                       # static Python check
            row = pl.multiple_of(row, 8)         # sublane-aligned slice hint
        gates = gx_ref[pl.ds(row, batch), :] + jnp.dot(
            h, whh_ref[...], preferred_element_type=jnp.float32)
        act = jnp.tanh(gates * scale) * scale + offset
        i_g = act[:, 0 * H:1 * H]
        f_g = act[:, 1 * H:2 * H]
        g_g = act[:, 2 * H:3 * H]
        o_g = act[:, 3 * H:4 * H]
        c_new = f_g * c + i_g * g_g
        h_new = o_g * jnp.tanh(c_new)
        # History store: on the vst slot, off the h/c carry dependence chain.
        hist_ref[pl.ds(row, batch), :] = h_new
        return h_new, c_new

    h0 = jnp.zeros((batch, H), jnp.float32)
    c0 = jnp.zeros((batch, H), jnp.float32)
    jax.lax.fori_loop(0, seq_len, step, (h0, c0),
                      unroll=True if seq_len <= 32 else 8)

    # ---- Epilogue: .view(-1, SEQ_LEN, T) group mean + hidden2tag + log_softmax. ----
    # routing_ref is (BO, S*B) with routing[g, t*B + b] = (flat_row // S == g) / S,
    # reproducing the original's batch/seq-mixing mean exactly; since hidden2tag is
    # affine, projecting the group-mean of h equals the mean of per-row projections.
    mean_h = jnp.dot(routing_ref[...], hist_ref[...],
                     preferred_element_type=jnp.float32)
    logits = jnp.dot(mean_h, wtag_ref[...],
                     preferred_element_type=jnp.float32) + btag_ref[...]
    mx = jnp.max(logits, axis=-1, keepdims=True)
    ex = jnp.exp(logits - mx)
    out_ref[...] = (logits - mx
                    - jnp.log(jnp.sum(ex, axis=-1, keepdims=True))
                    ).astype(out_ref.dtype)


def lstm_fused_call(x_flat, w_ih, b, w_hh, routing, w_tag, b_tag, *, seq_len, batch):
    SB, _ = x_flat.shape
    G = w_ih.shape[1]                 # 4H
    H = w_hh.shape[0]
    BO = routing.shape[0]             # == (S*B) // S == B
    T = w_tag.shape[1]
    return pl.pallas_call(
        functools.partial(lstm_fused_kernel, seq_len=seq_len, batch=batch),
        out_shape=jax.ShapeDtypeStruct((BO, T), jnp.float32),
        in_specs=[pl.BlockSpec(memory_space=pltpu.MemorySpace.VMEM)] * 7,
        out_specs=pl.BlockSpec(memory_space=pltpu.MemorySpace.VMEM),
        scratch_shapes=[pltpu.VMEM((SB, G), jnp.float32),    # gates_x (prologue)
                        pltpu.VMEM((SB, H), jnp.float32)],   # h history
    )(x_flat, w_ih, b, w_hh, routing, w_tag, b_tag)


# ----------------------------------------------------------------------------
# Full forward (embedding gather + glue in plain JAX, hot path in Pallas).
# ----------------------------------------------------------------------------
@jax.jit
def lstm_classifier_forward(sentence, emb_table, w_ih, w_hh, b, w_tag, b_tag):
    S, B = sentence.shape
    # Embedding lookup (frozen table); .view(SEQ_LEN, batch, -1) is a no-op for
    # (S, B) indices.  Kept as an XLA gather (see TODO re: v7x VMEM at prod vocab).
    embeds = jnp.take(emb_table, sentence, axis=0)            # (S, B, E)
    E = embeds.shape[-1]
    BO = (S * B) // S                                         # first dim of .view(-1, S, T)
    r = jnp.arange(S * B)
    routing = ((r[None, :] // S) == jnp.arange(BO)[:, None]).astype(jnp.float32)
    routing = routing * (1.0 / S)                             # fold the mean's 1/S
    return lstm_fused_call(embeds.reshape(S * B, E), w_ih, b, w_hh, routing,
                           w_tag, b_tag, seq_len=S, batch=B)  # (B, T)


# ----------------------------------------------------------------------------
# Pure-JAX reference (literal original semantics) for correctness checking.
# ----------------------------------------------------------------------------
def reference_forward(sentence, emb_table, w_ih, w_hh, b, w_tag, b_tag):
    embeds = jnp.take(emb_table, sentence, axis=0)
    B = sentence.shape[1]
    H = w_hh.shape[0]

    def step(carry, x):
        h, c = carry
        gates = x @ w_ih + h @ w_hh + b[0]
        i_g, f_g, g_g, o_g = jnp.split(gates, 4, axis=-1)
        i_g = jax.nn.sigmoid(i_g)
        f_g = jax.nn.sigmoid(f_g)
        g_g = jnp.tanh(g_g)
        o_g = jax.nn.sigmoid(o_g)
        c = f_g * c + i_g * g_g
        h = o_g * jnp.tanh(c)
        tag = h @ w_tag + b_tag[0]
        return (h, c), tag

    init = (jnp.zeros((B, H), jnp.float32), jnp.zeros((B, H), jnp.float32))
    _, tags = jax.lax.scan(step, init, embeds)               # (S, B, T)
    S, _, T = tags.shape
    tags = tags.reshape(S * B, T).reshape(-1, S, T)          # original .view mixing
    m = jnp.mean(tags, axis=1)
    return jax.nn.log_softmax(m, axis=-1)


if __name__ == "__main__":
    key = jax.random.PRNGKey(0)
    k_emb, k_wih, k_whh, k_bih, k_bhh, k_wt, k_bt, k_tok = jax.random.split(key, 8)

    # Deterministic synthetic parameters (shapes from the module's __init__).
    emb_table = jax.random.normal(k_emb, (VOCAB, EMBEDDING_DIM), jnp.float32) * 0.1
    # nn.LSTM params: weight_ih (4H, E), weight_hh (4H, H), biases (4H,) — stored transposed.
    w_ih = jax.random.normal(k_wih, (EMBEDDING_DIM, 4 * HIDDEN_DIM), jnp.float32) * 0.1
    w_hh = jax.random.normal(k_whh, (HIDDEN_DIM, 4 * HIDDEN_DIM), jnp.float32) * 0.1
    b_ih = jax.random.normal(k_bih, (4 * HIDDEN_DIM,), jnp.float32) * 0.1
    b_hh = jax.random.normal(k_bhh, (4 * HIDDEN_DIM,), jnp.float32) * 0.1
    b = (b_ih + b_hh).reshape(1, 4 * HIDDEN_DIM)
    # hidden2tag: weight (T, H), bias (T,) — stored transposed.
    w_tag = jax.random.normal(k_wt, (HIDDEN_DIM, TAGSET_SIZE), jnp.float32) * 0.1
    b_tag = jax.random.normal(k_bt, (TAGSET_SIZE,), jnp.float32).reshape(1, TAGSET_SIZE) * 0.1

    # Input token ids, seq-major: (SEQ_LEN, BATCH)
    sentence = jax.random.randint(k_tok, (SEQ_LEN, BATCH), 0, VOCAB, dtype=jnp.int32)

    out = lstm_classifier_forward(sentence, emb_table, w_ih, w_hh, b, w_tag, b_tag)
    out = jax.block_until_ready(out)

    ref = reference_forward(sentence, emb_table, w_ih, w_hh, b, w_tag, b_tag)
    assert out.shape == (BATCH, TAGSET_SIZE), out.shape
    assert jnp.allclose(out, ref, atol=2e-4, rtol=2e-4), (out, ref)

    print("KERNEL_OK")
</pallas_src>

<mosaic_0001>
module attributes {stable_mosaic.version = 11 : i64} {
  func.func @lstm_fused_kernel(%arg0: memref<128x128xf32, #tpu.memory_space<vmem>>, %arg1: memref<128x128xf32, #tpu.memory_space<vmem>>, %arg2: memref<1x128xf32, #tpu.memory_space<vmem>>, %arg3: memref<32x128xf32, #tpu.memory_space<vmem>>, %arg4: memref<8x128xf32, #tpu.memory_space<vmem>>, %arg5: memref<32x20xf32, #tpu.memory_space<vmem>>, %arg6: memref<1x20xf32, #tpu.memory_space<vmem>>, %arg7: memref<8x20xf32, #tpu.memory_space<vmem>>, %arg8: memref<128x128xf32, #tpu.memory_space<vmem>>, %arg9: memref<128x32xf32, #tpu.memory_space<vmem>>) attributes {dimension_semantics = [], scalar_prefetch = 0 : i64, scratch_operands = 2 : i64, tpu.core_type = #tpu.core_type<tc>} {
    %c0 = arith.constant 0 : index
    %c0_0 = arith.constant 0 : index
    %0 = vector.load %arg0[%c0, %c0_0] : memref<128x128xf32, #tpu.memory_space<vmem>>, vector<128x128xf32>
    %c0_1 = arith.constant 0 : index
    %c0_2 = arith.constant 0 : index
    %1 = vector.load %arg1[%c0_1, %c0_2] : memref<128x128xf32, #tpu.memory_space<vmem>>, vector<128x128xf32>
    %cst = arith.constant dense<0.000000e+00> : vector<128x128xf32>
    %2 = tpu.matmul %0, %1, %cst {dimension_numbers = #tpu.dot_dimension_numbers<[1], [0], [0], [1], [0, 0, 1, 1], [], []>} : vector<128x128xf32>, vector<128x128xf32>, vector<128x128xf32> -> vector<128x128xf32>
    %c0_3 = arith.constant 0 : index
    %c0_4 = arith.constant 0 : index
    %3 = vector.load %arg2[%c0_3, %c0_4] : memref<1x128xf32, #tpu.memory_space<vmem>>, vector<1x128xf32>
    %4 = vector.broadcast %3 : vector<1x128xf32> to vector<128x128xf32>
    %5 = arith.addf %2, %4 : vector<128x128xf32>
    %c0_5 = arith.constant 0 : index
    %c0_6 = arith.constant 0 : index
    %6 = vector.load %arg8[%c0_5, %c0_6] : memref<128x128xf32, #tpu.memory_space<vmem>>, vector<128x128xf32>
    tpu.vector_store %arg8[%c0_5, %c0_6], %5 {strides = array<i32>} : memref<128x128xf32, #tpu.memory_space<vmem>>, vector<128x128xf32>,
    %7 = tpu.iota {dimensions = array<i32: 1>} : vector<1x128xi32>
    %c64_i32 = arith.constant 64 : i32
    %8 = vector.broadcast %c64_i32 : i32 to vector<1x128xi32>
    %9 = arith.cmpi sge, %7, %8 : vector<1x128xi32>
    %c96_i32 = arith.constant 96 : i32
    %10 = vector.broadcast %c96_i32 : i32 to vector<1x128xi32>
    %11 = arith.cmpi slt, %7, %10 : vector<1x128xi32>
    %12 = arith.andi %9, %11 : vector<1x128xi1>
    %cst_7 = arith.constant 1.000000e+00 : f32
    %cst_8 = arith.constant 5.000000e-01 : f32
    %13 = vector.broadcast %cst_7 : f32 to vector<1x128xf32>
    %14 = vector.broadcast %cst_8 : f32 to vector<1x128xf32>
    %15 = arith.select %12, %13, %14 : vector<1x128xi1>, vector<1x128xf32>
    %cst_9 = arith.constant 0.000000e+00 : f32
    %cst_10 = arith.constant 5.000000e-01 : f32
    %16 = vector.broadcast %cst_9 : f32 to vector<1x128xf32>
    %17 = vector.broadcast %cst_10 : f32 to vector<1x128xf32>
    %18 = arith.select %12, %16, %17 : vector<1x128xi1>, vector<1x128xf32>
    %cst_11 = arith.constant 0.000000e+00 : f32
    %19 = vector.broadcast %cst_11 : f32 to vector<8x32xf32>
    %cst_12 = arith.constant 0.000000e+00 : f32
    %20 = vector.broadcast %cst_12 : f32 to vector<8x32xf32>
    %c0_i32 = arith.constant 0 : i32
    %c8_i32 = arith.constant 8 : i32
    %21 = arith.muli %c0_i32, %c8_i32 : i32
    %22 = tpu.assume_multiple %21, 8 : i32
    %23 = arith.index_cast %22 : i32 to index
    %c0_13 = arith.constant 0 : index
    %24 = vector.load %arg8[%23, %c0_13] : memref<128x128xf32, #tpu.memory_space<vmem>>, vector<8x128xf32>
    %c0_14 = arith.constant 0 : index
    %c0_15 = arith.constant 0 : index
    %25 = vector.load %arg3[%c0_14, %c0_15] : memref<32x128xf32, #tpu.memory_space<vmem>>, vector<32x128xf32>
    %cst_16 = arith.constant dense<0.000000e+00> : vector<8x128xf32>
    %26 = tpu.matmul %19, %25, %cst_16 {dimension_numbers = #tpu.dot_dimension_numbers<[1], [0], [0], [1], [0, 0, 1, 1], [], []>} : vector<8x32xf32>, vector<32x128xf32>, vector<8x128xf32> -> vector<8x128xf32>
    %27 = arith.addf %24, %26 : vector<8x128xf32>
    %28 = vector.broadcast %15 : vector<1x128xf32> to vector<8x128xf32>
    %29 = arith.mulf %27, %28 : vector<8x128xf32>
    %30 = math.tanh %29 : vector<8x128xf32>
    %31 = vector.broadcast %15 : vector<1x128xf32> to vector<8x128xf32>
    %32 = arith.mulf %30, %31 : vector<8x128xf32>
    %33 = vector.broadcast %18 : vector<1x128xf32> to vector<8x128xf32>
    %34 = arith.addf %32, %33 : vector<8x128xf32>
    %35 = vector.extract_strided_slice %34 {offsets = [0, 0], sizes = [8, 32], strides = [1, 1]} : vector<8x128xf32> to vector<8x32xf32>
    %36 = vector.extract_strided_slice %34 {offsets = [0, 32], sizes = [8, 32], strides = [1, 1]} : vector<8x128xf32> to vector<8x32xf32>
    %37 = vector.extract_strided_slice %34 {offsets = [0, 64], sizes = [8, 32], strides = [1, 1]} : vector<8x128xf32> to vector<8x32xf32>
    %38 = vector.extract_strided_slice %34 {offsets = [0, 96], sizes = [8, 32], strides = [1, 1]} : vector<8x128xf32> to vector<8x32xf32>
    %39 = arith.mulf %36, %20 : vector<8x32xf32>
    %40 = arith.mulf %35, %37 : vector<8x32xf32>
    %41 = arith.addf %39, %40 : vector<8x32xf32>
    %42 = math.tanh %41 : vector<8x32xf32>
    %43 = arith.mulf %38, %42 : vector<8x32xf32>
    %44 = arith.index_cast %22 : i32 to index
    %c0_17 = arith.constant 0 : index
    %45 = vector.load %arg9[%44, %c0_17] : memref<128x32xf32, #tpu.memory_space<vmem>>, vector<8x32xf32>
    tpu.vector_store %arg9[%44, %c0_17], %43 {strides = array<i32>} : memref<128x32xf32, #tpu.memory_space<vmem>>, vector<8x32xf32>,
    %c1_i32 = arith.constant 1 : i32
    %c8_i32_18 = arith.constant 8 : i32
    %46 = arith.muli %c1_i32, %c8_i32_18 : i32
    %47 = tpu.assume_multiple %46, 8 : i32
    %48 = arith.index_cast %47 : i32 to index
    %c0_19 = arith.constant 0 : index
    %49 = vector.load %arg8[%48, %c0_19] : memref<128x128xf32, #tpu.memory_space<vmem>>, vector<8x128xf32>
    %c0_20 = arith.constant 0 : index
    %c0_21 = arith.constant 0 : index
    %50 = vector.load %arg3[%c0_20, %c0_21] : memref<32x128xf32, #tpu.memory_space<vmem>>, vector<32x128xf32>
    %cst_22 = arith.constant dense<0.000000e+00> : vector<8x128xf32>
    %51 = tpu.matmul %43, %50, %cst_22 {dimension_numbers = #tpu.dot_dimension_numbers<[1], [0], [0], [1], [0, 0, 1, 1], [], []>} : vector<8x32xf32>, vector<32x128xf32>, vector<8x128xf32> -> vector<8x128xf32>
    %52 = arith.addf %49, %51 : vector<8x128xf32>
    %53 = vector.broadcast %15 : vector<1x128xf32> to vector<8x128xf32>
    %54 = arith.mulf %52, %53 : vector<8x128xf32>
    %55 = math.tanh %54 : vector<8x128xf32>
    %56 = vector.broadcast %15 : vector<1x128xf32> to vector<8x128xf32>
    %57 = arith.mulf %55, %56 : vector<8x128xf32>
    %58 = vector.broadcast %18 : vector<1x128xf32> to vector<8x128xf32>
    %59 = arith.addf %57, %58 : vector<8x128xf32>
    %60 = vector.extract_strided_slice %59 {offsets = [0, 0], sizes = [8, 32], strides = [1, 1]} : vector<8x128xf32> to vector<8x32xf32>
    %61 = vector.extract_strided_slice %59 {offsets = [0, 32], sizes = [8, 32], strides = [1, 1]} : vector<8x128xf32> to vector<8x32xf32>
    %62 = vector.extract_strided_slice %59 {offsets = [0, 64], sizes = [8, 32], strides = [1, 1]} : vector<8x128xf32> to vector<8x32xf32>
    %63 = vector.extract_strided_slice %59 {offsets = [0, 96], sizes = [8, 32], strides = [1, 1]} : vector<8x128xf32> to vector<8x32xf32>
    %64 = arith.mulf %61, %41 : vector<8x32xf32>
    %65 = arith.mulf %60, %62 : vector<8x32xf32>
    %66 = arith.addf %64, %65 : vector<8x32xf32>
    %67 = math.tanh %66 : vector<8x32xf32>
    %68 = arith.mulf %63, %67 : vector<8x32xf32>
    %69 = arith.index_cast %47 : i32 to index
    %c0_23 = arith.constant 0 : index
    %70 = vector.load %arg9[%69, %c0_23] : memref<128x32xf32, #tpu.memory_space<vmem>>, vector<8x32xf32>
    tpu.vector_store %arg9[%69, %c0_23], %68 {strides = array<i32>} : memref<128x32xf32, #tpu.memory_space<vmem>>, vector<8x32xf32>,
    %c2_i32 = arith.constant 2 : i32
    %c8_i32_24 = arith.constant 8 : i32
    %71 = arith.muli %c2_i32, %c8_i32_24 : i32
    %72 = tpu.assume_multiple %71, 8 : i32
    %73 = arith.index_cast %72 : i32 to index
    %c0_25 = arith.constant 0 : index
    %74 = vector.load %arg8[%73, %c0_25] : memref<128x128xf32, #tpu.memory_space<vmem>>, vector<8x128xf32>
    %c0_26 = arith.constant 0 : index
    %c0_27 = arith.constant 0 : index
    %75 = vector.load %arg3[%c0_26, %c0_27] : memref<32x128xf32, #tpu.memory_space<vmem>>, vector<32x128xf32>
    %cst_28 = arith.constant dense<0.000000e+00> : vector<8x128xf32>
    %76 = tpu.matmul %68, %75, %cst_28 {dimension_numbers = #tpu.dot_dimension_numbers<[1], [0], [0], [1], [0, 0, 1, 1], [], []>} : vector<8x32xf32>, vector<32x128xf32>, vector<8x128xf32> -> vector<8x128xf32>
    %77 = arith.addf %74, %76 : vector<8x128xf32>
    %78 = vector.broadcast %15 : vector<1x128xf32> to vector<8x128xf32>
    %79 = arith.mulf %77, %78 : vector<8x128xf32>
    %80 = math.tanh %79 : vector<8x128xf32>
    %81 = vector.broadcast %15 : vector<1x128xf32> to vector<8x128xf32>
    %82 = arith.mulf %80, %81 : vector<8x128xf32>
    %83 = vector.broadcast %18 : vector<1x128xf32> to vector<8x128xf32>
    %84 = arith.addf %82, %83 : vector<8x128xf32>
    %85 = vector.extract_strided_slice %84 {offsets = [0, 0], sizes = [8, 32], strides = [1, 1]} : vector<8x128xf32> to vector<8x32xf32>
    %86 = vector.extract_strided_slice %84 {offsets = [0, 32], sizes = [8, 32], strides = [1, 1]} : vector<8x128xf32> to vector<8x32xf32>
    %87 = vector.extract_strided_slice %84 {offsets = [0, 64], sizes = [8, 32], strides = [1, 1]} : vector<8x128xf32> to vector<8x32xf32>
    %88 = vector.extract_strided_slice %84 {offsets = [0, 96], sizes = [8, 32], strides = [1, 1]} : vector<8x128xf32> to vector<8x32xf32>
    %89 = arith.mulf %86, %66 : vector<8x32xf32>
    %90 = arith.mulf %85, %87 : vector<8x32xf32>
    %91 = arith.addf %89, %90 : vector<8x32xf32>
    %92 = math.tanh %91 : vector<8x32xf32>
    %93 = arith.mulf %88, %92 : vector<8x32xf32>
    %94 = arith.index_cast %72 : i32 to index
    %c0_29 = arith.constant 0 : index
    %95 = vector.load %arg9[%94, %c0_29] : memref<128x32xf32, #tpu.memory_space<vmem>>, vector<8x32xf32>
    tpu.vector_store %arg9[%94, %c0_29], %93 {strides = array<i32>} : memref<128x32xf32, #tpu.memory_space<vmem>>, vector<8x32xf32>,
    %c3_i32 = arith.constant 3 : i32
    %c8_i32_30 = arith.constant 8 : i32
    %96 = arith.muli %c3_i32, %c8_i32_30 : i32
    %97 = tpu.assume_multiple %96, 8 : i32
    %98 = arith.index_cast %97 : i32 to index
    %c0_31 = arith.constant 0 : index
    %99 = vector.load %arg8[%98, %c0_31] : memref<128x128xf32, #tpu.memory_space<vmem>>, vector<8x128xf32>
    %c0_32 = arith.constant 0 : index
    %c0_33 = arith.constant 0 : index
    %100 = vector.load %arg3[%c0_32, %c0_33] : memref<32x128xf32, #tpu.memory_space<vmem>>, vector<32x128xf32>
    %cst_34 = arith.constant dense<0.000000e+00> : vector<8x128xf32>
    %101 = tpu.matmul %93, %100, %cst_34 {dimension_numbers = #tpu.dot_dimension_numbers<[1], [0], [0], [1], [0, 0, 1, 1], [], []>} : vector<8x32xf32>, vector<32x128xf32>, vector<8x128xf32> -> vector<8x128xf32>
    %102 = arith.addf %99, %101 : vector<8x128xf32>
    %103 = vector.broadcast %15 : vector<1x128xf32> to vector<8x128xf32>
    %104 = arith.mulf %102, %103 : vector<8x128xf32>
    %105 = math.tanh %104 : vector<8x128xf32>
    %106 = vector.broadcast %15 : vector<1x128xf32> to vector<8x128xf32>
    %107 = arith.mulf %105, %106 : vector<8x128xf32>
    %108 = vector.broadcast %18 : vector<1x128xf32> to vector<8x128xf32>
    %109 = arith.addf %107, %108 : vector<8x128xf32>
    %110 = vector.extract_strided_slice %109 {offsets = [0, 0], sizes = [8, 32], strides = [1, 1]} : vector<8x128xf32> to vector<8x32xf32>
    %111 = vector.extract_strided_slice %109 {offsets = [0, 32], sizes = [8, 32], strides = [1, 1]} : vector<8x128xf32> to vector<8x32xf32>
    %112 = vector.extract_strided_slice %109 {offsets = [0, 64], sizes = [8, 32], strides = [1, 1]} : vector<8x128xf32> to vector<8x32xf32>
    %113 = vector.extract_strided_slice %109 {offsets = [0, 96], sizes = [8, 32], strides = [1, 1]} : vector<8x128xf32> to vector<8x32xf32>
    %114 = arith.mulf %111, %91 : vector<8x32xf32>
    %115 = arith.mulf %110, %112 : vector<8x32xf32>
    %116 = arith.addf %114, %115 : vector<8x32xf32>
    %117 = math.tanh %116 : vector<8x32xf32>
    %118 = arith.mulf %113, %117 : vector<8x32xf32>
    %119 = arith.index_cast %97 : i32 to index
    %c0_35 = arith.constant 0 : index
    %120 = vector.load %arg9[%119, %c0_35] : memref<128x32xf32, #tpu.memory_space<vmem>>, vector<8x32xf32>
    tpu.vector_store %arg9[%119, %c0_35], %118 {strides = array<i32>} : memref<128x32xf32, #tpu.memory_space<vmem>>, vector<8x32xf32>,
    %c4_i32 = arith.constant 4 : i32
    %c8_i32_36 = arith.constant 8 : i32
    %121 = arith.muli %c4_i32, %c8_i32_36 : i32
    %122 = tpu.assume_multiple %121, 8 : i32
    %123 = arith.index_cast %122 : i32 to index
    %c0_37 = arith.constant 0 : index
    %124 = vector.load %arg8[%123, %c0_37] : memref<128x128xf32, #tpu.memory_space<vmem>>, vector<8x128xf32>
    %c0_38 = arith.constant 0 : index
    %c0_39 = arith.constant 0 : index
    %125 = vector.load %arg3[%c0_38, %c0_39] : memref<32x128xf32, #tpu.memory_space<vmem>>, vector<32x128xf32>
    %cst_40 = arith.constant dense<0.000000e+00> : vector<8x128xf32>
    %126 = tpu.matmul %118, %125, %cst_40 {dimension_numbers = #tpu.dot_dimension_numbers<[1], [0], [0], [1], [0, 0, 1, 1], [], []>} : vector<8x32xf32>, vector<32x128xf32>, vector<8x128xf32> -> vector<8x128xf32>
    %127 = arith.addf %124, %126 : vector<8x128xf32>
    %128 = vector.broadcast %15 : vector<1x128xf32> to vector<8x128xf32>
    %129 = arith.mulf %127, %128 : vector<8x128xf32>
    %130 = math.tanh %129 : vector<8x128xf32>
    %131 = vector.broadcast %15 : vector<1x128xf32> to vector<8x128xf32>
    %132 = arith.mulf %130, %131 : vector<8x128xf32>
    %133 = vector.broadcast %18 : vector<1x128xf32> to vector<8x128xf32>
    %134 = arith.addf %132, %133 : vector<8x128xf32>
    %135 = vector.extract_strided_slice %134 {offsets = [0, 0], sizes = [8, 32], strides = [1, 1]} : vector<8x128xf32> to vector<8x32xf32>
    %136 = vector.extract_strided_slice %134 {offsets = [0, 32], sizes = [8, 32], strides = [1, 1]} : vector<8x128xf32> to vector<8x32xf32>
    %137 = vector.extract_strided_slice %134 {offsets = [0, 64], sizes = [8, 32], strides = [1, 1]} : vector<8x128xf32> to vector<8x32xf32>
    %138 = vector.extract_strided_slice %134 {offsets = [0, 96], sizes = [8, 32], strides = [1, 1]} : vector<8x128xf32> to vector<8x32xf32>
    %139 = arith.mulf %136, %116 : vector<8x32xf32>
    %140 = arith.mulf %135, %137 : vector<8x32xf32>
    %141 = arith.addf %139, %140 : vector<8x32xf32>
    %142 = math.tanh %141 : vector<8x32xf32>
    %143 = arith.mulf %138, %142 : vector<8x32xf32>
    %144 = arith.index_cast %122 : i32 to index
    %c0_41 = arith.constant 0 : index
    %145 = vector.load %arg9[%144, %c0_41] : memref<128x32xf32, #tpu.memory_space<vmem>>, vector<8x32xf32>
    tpu.vector_store %arg9[%144, %c0_41], %143 {strides = array<i32>} : memref<128x32xf32, #tpu.memory_space<vmem>>, vector<8x32xf32>,
    %c5_i32 = arith.constant 5 : i32
    %c8_i32_42 = arith.constant 8 : i32
    %146 = arith.muli %c5_i32, %c8_i32_42 : i32
    %147 = tpu.assume_multiple %146, 8 : i32
    %148 = arith.index_cast %147 : i32 to index
    %c0_43 = arith.constant 0 : index
    %149 = vector.load %arg8[%148, %c0_43] : memref<128x128xf32, #tpu.memory_space<vmem>>, vector<8x128xf32>
    %c0_44 = arith.constant 0 : index
    %c0_45 = arith.constant 0 : index
    %150 = vector.load %arg3[%c0_44, %c0_45] : memref<32x128xf32, #tpu.memory_space<vmem>>, vector<32x128xf32>
    %cst_46 = arith.constant dense<0.000000e+00> : vector<8x128xf32>
    %151 = tpu.matmul %143, %150, %cst_46 {dimension_numbers = #tpu.dot_dimension_numbers<[1], [0], [0], [1], [0, 0, 1, 1], [], []>} : vector<8x32xf32>, vector<32x128xf32>, vector<8x128xf32> -> vector<8x128xf32>
    %152 = arith.addf %149, %151 : vector<8x128xf32>
    %153 = vector.broadcast %15 : vector<1x128xf32> to vector<8x128xf32>
    %154 = arith.mulf %152, %153 : vector<8x128xf32>
    %155 = math.tanh %154 : vector<8x128xf32>
    %156 = vector.broadcast %15 : vector<1x128xf32> to vector<8x128xf32>
    %157 = arith.mulf %155, %156 : vector<8x128xf32>
    %158 = vector.broadcast %18 : vector<1x128xf32> to vector<8x128xf32>
    %159 = arith.addf %157, %158 : vector<8x128xf32>
    %160 = vector.extract_strided_slice %159 {offsets = [0, 0], sizes = [8, 32], strides = [1, 1]} : vector<8x128xf32> to vector<8x32xf32>
    %161 = vector.extract_strided_slice %159 {offsets = [0, 32], sizes = [8, 32], strides = [1, 1]} : vector<8x128xf32> to vector<8x32xf32>
    %162 = vector.extract_strided_slice %159 {offsets = [0, 64], sizes = [8, 32], strides = [1, 1]} : vector<8x128xf32> to vector<8x32xf32>
    %163 = vector.extract_strided_slice %159 {offsets = [0, 96], sizes = [8, 32], strides = [1, 1]} : vector<8x128xf32> to vector<8x32xf32>
    %164 = arith.mulf %161, %141 : vector<8x32xf32>
    %165 = arith.mulf %160, %162 : vector<8x32xf32>
    %166 = arith.addf %164, %165 : vector<8x32xf32>
    %167 = math.tanh %166 : vector<8x32xf32>
    %168 = arith.mulf %163, %167 : vector<8x32xf32>
    %169 = arith.index_cast %147 : i32 to index
    %c0_47 = arith.constant 0 : index
    %170 = vector.load %arg9[%169, %c0_47] : memref<128x32xf32, #tpu.memory_space<vmem>>, vector<8x32xf32>
    tpu.vector_store %arg9[%169, %c0_47], %168 {strides = array<i32>} : memref<128x32xf32, #tpu.memory_space<vmem>>, vector<8x32xf32>,
    %c6_i32 = arith.constant 6 : i32
    %c8_i32_48 = arith.constant 8 : i32
    %171 = arith.muli %c6_i32, %c8_i32_48 : i32
    %172 = tpu.assume_multiple %171, 8 : i32
    %173 = arith.index_cast %172 : i32 to index
    %c0_49 = arith.constant 0 : index
    %174 = vector.load %arg8[%173, %c0_49] : memref<128x128xf32, #tpu.memory_space<vmem>>, vector<8x128xf32>
    %c0_50 = arith.constant 0 : index
    %c0_51 = arith.constant 0 : index
    %175 = vector.load %arg3[%c0_50, %c0_51] : memref<32x128xf32, #tpu.memory_space<vmem>>, vector<32x128xf32>
    %cst_52 = arith.constant dense<0.000000e+00> : vector<8x128xf32>
    %176 = tpu.matmul %168, %175, %cst_52 {dimension_numbers = #tpu.dot_dimension_numbers<[1], [0], [0], [1], [0, 0, 1, 1], [], []>} : vector<8x32xf32>, vector<32x128xf32>, vector<8x128xf32> -> vector<8x128xf32>
    %177 = arith.addf %174, %176 : vector<8x128xf32>
    %178 = vector.broadcast %15 : vector<1x128xf32> to vector<8x128xf32>
    %179 = arith.mulf %177, %178 : vector<8x128xf32>
    %180 = math.tanh %179 : vector<8x128xf32>
    %181 = vector.broadcast %15 : vector<1x128xf32> to vector<8x128xf32>
    %182 = arith.mulf %180, %181 : vector<8x128xf32>
    %183 = vector.broadcast %18 : vector<1x128xf32> to vector<8x128xf32>
    %184 = arith.addf %182, %183 : vector<8x128xf32>
    %185 = vector.extract_strided_slice %184 {offsets = [0, 0], sizes = [8, 32], strides = [1, 1]} : vector<8x128xf32> to vector<8x32xf32>
    %186 = vector.extract_strided_slice %184 {offsets = [0, 32], sizes = [8, 32], strides = [1, 1]} : vector<8x128xf32> to vector<8x32xf32>
    %187 = vector.extract_strided_slice %184 {offsets = [0, 64], sizes = [8, 32], strides = [1, 1]} : vector<8x128xf32> to vector<8x32xf32>
    %188 = vector.extract_strided_slice %184 {offsets = [0, 96], sizes = [8, 32], strides = [1, 1]} : vector<8x128xf32> to vector<8x32xf32>
    %189 = arith.mulf %186, %166 : vector<8x32xf32>
    %190 = arith.mulf %185, %187 : vector<8x32xf32>
    %191 = arith.addf %189, %190 : vector<8x32xf32>
    %192 = math.tanh %191 : vector<8x32xf32>
    %193 = arith.mulf %188, %192 : vector<8x32xf32>
    %194 = arith.index_cast %172 : i32 to index
    %c0_53 = arith.constant 0 : index
    %195 = vector.load %arg9[%194, %c0_53] : memref<128x32xf32, #tpu.memory_space<vmem>>, vector<8x32xf32>
    tpu.vector_store %arg9[%194, %c0_53], %193 {strides = array<i32>} : memref<128x32xf32, #tpu.memory_space<vmem>>, vector<8x32xf32>,
    %c7_i32 = arith.constant 7 : i32
    %c8_i32_54 = arith.constant 8 : i32
    %196 = arith.muli %c7_i32, %c8_i32_54 : i32
    %197 = tpu.assume_multiple %196, 8 : i32
    %198 = arith.index_cast %197 : i32 to index
    %c0_55 = arith.constant 0 : index
    %199 = vector.load %arg8[%198, %c0_55] : memref<128x128xf32, #tpu.memory_space<vmem>>, vector<8x128xf32>
    %c0_56 = arith.constant 0 : index
    %c0_57 = arith.constant 0 : index
    %200 = vector.load %arg3[%c0_56, %c0_57] : memref<32x128xf32, #tpu.memory_space<vmem>>, vector<32x128xf32>
    %cst_58 = arith.constant dense<0.000000e+00> : vector<8x128xf32>
    %201 = tpu.matmul %193, %200, %cst_58 {dimension_numbers = #tpu.dot_dimension_numbers<[1], [0], [0], [1], [0, 0, 1, 1], [], []>} : vector<8x32xf32>, vector<32x128xf32>, vector<8x128xf32> -> vector<8x128xf32>
    %202 = arith.addf %199, %201 : vector<8x128xf32>
    %203 = vector.broadcast %15 : vector<1x128xf32> to vector<8x128xf32>
    %204 = arith.mulf %202, %203 : vector<8x128xf32>
    %205 = math.tanh %204 : vector<8x128xf32>
    %206 = vector.broadcast %15 : vector<1x128xf32> to vector<8x128xf32>
    %207 = arith.mulf %205, %206 : vector<8x128xf32>
    %208 = vector.broadcast %18 : vector<1x128xf32> to vector<8x128xf32>
    %209 = arith.addf %207, %208 : vector<8x128xf32>
    %210 = vector.extract_strided_slice %209 {offsets = [0, 0], sizes = [8, 32], strides = [1, 1]} : vector<8x128xf32> to vector<8x32xf32>
    %211 = vector.extract_strided_slice %209 {offsets = [0, 32], sizes = [8, 32], strides = [1, 1]} : vector<8x128xf32> to vector<8x32xf32>
    %212 = vector.extract_strided_slice %209 {offsets = [0, 64], sizes = [8, 32], strides = [1, 1]} : vector<8x128xf32> to vector<8x32xf32>
    %213 = vector.extract_strided_slice %209 {offsets = [0, 96], sizes = [8, 32], strides = [1, 1]} : vector<8x128xf32> to vector<8x32xf32>
    %214 = arith.mulf %211, %191 : vector<8x32xf32>
    %215 = arith.mulf %210, %212 : vector<8x32xf32>
    %216 = arith.addf %214, %215 : vector<8x32xf32>
    %217 = math.tanh %216 : vector<8x32xf32>
    %218 = arith.mulf %213, %217 : vector<8x32xf32>
    %219 = arith.index_cast %197 : i32 to index
    %c0_59 = arith.constant 0 : index
    %220 = vector.load %arg9[%219, %c0_59] : memref<128x32xf32, #tpu.memory_space<vmem>>, vector<8x32xf32>
    tpu.vector_store %arg9[%219, %c0_59], %218 {strides = array<i32>} : memref<128x32xf32, #tpu.memory_space<vmem>>, vector<8x32xf32>,
    %c8_i32_60 = arith.constant 8 : i32
    %c8_i32_61 = arith.constant 8 : i32
    %221 = arith.muli %c8_i32_60, %c8_i32_61 : i32
    %222 = tpu.assume_multiple %221, 8 : i32
    %223 = arith.index_cast %222 : i32 to index
    %c0_62 = arith.constant 0 : index
    %224 = vector.load %arg8[%223, %c0_62] : memref<128x128xf32, #tpu.memory_space<vmem>>, vector<8x128xf32>
    %c0_63 = arith.constant 0 : index
    %c0_64 = arith.constant 0 : index
    %225 = vector.load %arg3[%c0_63, %c0_64] : memref<32x128xf32, #tpu.memory_space<vmem>>, vector<32x128xf32>
    %cst_65 = arith.constant dense<0.000000e+00> : vector<8x128xf32>
    %226 = tpu.matmul %218, %225, %cst_65 {dimension_numbers = #tpu.dot_dimension_numbers<[1], [0], [0], [1], [0, 0, 1, 1], [], []>} : vector<8x32xf32>, vector<32x128xf32>, vector<8x128xf32> -> vector<8x128xf32>
    %227 = arith.addf %224, %226 : vector<8x128xf32>
    %228 = vector.broadcast %15 : vector<1x128xf32> to vector<8x128xf32>
    %229 = arith.mulf %227, %228 : vector<8x128xf32>
    %230 = math.tanh %229 : vector<8x128xf32>
    %231 = vector.broadcast %15 : vector<1x128xf32> to vector<8x128xf32>
    %232 = arith.mulf %230, %231 : vector<8x128xf32>
    %233 = vector.broadcast %18 : vector<1x128xf32> to vector<8x128xf32>
    %234 = arith.addf %232, %233 : vector<8x128xf32>
    %235 = vector.extract_strided_slice %234 {offsets = [0, 0], sizes = [8, 32], strides = [1, 1]} : vector<8x128xf32> to vector<8x32xf32>
    %236 = vector.extract_strided_slice %234 {offsets = [0, 32], sizes = [8, 32], strides = [1, 1]} : vector<8x128xf32> to vector<8x32xf32>
    %237 = vector.extract_strided_slice %234 {offsets = [0, 64], sizes = [8, 32], strides = [1, 1]} : vector<8x128xf32> to vector<8x32xf32>
    %238 = vector.extract_strided_slice %234 {offsets = [0, 96], sizes = [8, 32], strides = [1, 1]} : vector<8x128xf32> to vector<8x32xf32>
    %239 = arith.mulf %236, %216 : vector<8x32xf32>
    %240 = arith.mulf %235, %237 : vector<8x32xf32>
    %241 = arith.addf %239, %240 : vector<8x32xf32>
    %242 = math.tanh %241 : vector<8x32xf32>
    %243 = arith.mulf %238, %242 : vector<8x32xf32>
    %244 = arith.index_cast %222 : i32 to index
    %c0_66 = arith.constant 0 : index
    %245 = vector.load %arg9[%244, %c0_66] : memref<128x32xf32, #tpu.memory_space<vmem>>, vector<8x32xf32>
    tpu.vector_store %arg9[%244, %c0_66], %243 {strides = array<i32>} : memref<128x32xf32, #tpu.memory_space<vmem>>, vector<8x32xf32>,
    %c9_i32 = arith.constant 9 : i32
    %c8_i32_67 = arith.constant 8 : i32
    %246 = arith.muli %c9_i32, %c8_i32_67 : i32
    %247 = tpu.assume_multiple %246, 8 : i32
    %248 = arith.index_cast %247 : i32 to index
    %c0_68 = arith.constant 0 : index
    %249 = vector.load %arg8[%248, %c0_68] : memref<128x128xf32, #tpu.memory_space<vmem>>, vector<8x128xf32>
    %c0_69 = arith.constant 0 : index
    %c0_70 = arith.constant 0 : index
    %250 = vector.load %arg3[%c0_69, %c0_70] : memref<32x128xf32, #tpu.memory_space<vmem>>, vector<32x128xf32>
    %cst_71 = arith.constant dense<0.000000e+00> : vector<8x128xf32>
    %251 = tpu.matmul %243, %250, %cst_71 {dimension_numbers = #tpu.dot_dimension_numbers<[1], [0], [0], [1], [0, 0, 1, 1], [], []>} : vector<8x32xf32>, vector<32x128xf32>, vector<8x128xf32> -> vector<8x128xf32>
    %252 = arith.addf %249, %251 : vector<8x128xf32>
    %253 = vector.broadcast %15 : vector<1x128xf32> to vector<8x128xf32>
    %254 = arith.mulf %252, %253 : vector<8x128xf32>
    %255 = math.tanh %254 : vector<8x128xf32>
    %256 = vector.broadcast %15 : vector<1x128xf32> to vector<8x128xf32>
    %257 = arith.mulf %255, %256 : vector<8x128xf32>
    %258 = vector.broadcast %18 : vector<1x128xf32> to vector<8x128xf32>
    %259 = arith.addf %257, %258 : vector<8x128xf32>
    %260 = vector.extract_strided_slice %259 {offsets = [0, 0], sizes = [8, 32], strides = [1, 1]} : vector<8x128xf32> to vector<8x32xf32>
    %261 = vector.extract_strided_slice %259 {offsets = [0, 32], sizes = [8, 32], strides = [1, 1]} : vector<8x128xf32> to vector<8x32xf32>
    %262 = vector.extract_strided_slice %259 {offsets = [0, 64], sizes = [8, 32], strides = [1, 1]} : vector<8x128xf32> to vector<8x32xf32>
    %263 = vector.extract_strided_slice %259 {offsets = [0, 96], sizes = [8, 32], strides = [1, 1]} : vector<8x128xf32> to vector<8x32xf32>
    %264 = arith.mulf %261, %241 : vector<8x32xf32>
    %265 = arith.mulf %260, %262 : vector<8x32xf32>
    %266 = arith.addf %264, %265 : vector<8x32xf32>
    %267 = math.tanh %266 : vector<8x32xf32>
    %268 = arith.mulf %263, %267 : vector<8x32xf32>
    %269 = arith.index_cast %247 : i32 to index
    %c0_72 = arith.constant 0 : index
    %270 = vector.load %arg9[%269, %c0_72] : memref<128x32xf32, #tpu.memory_space<vmem>>, vector<8x32xf32>
    tpu.vector_store %arg9[%269, %c0_72], %268 {strides = array<i32>} : memref<128x32xf32, #tpu.memory_space<vmem>>, vector<8x32xf32>,
    %c10_i32 = arith.constant 10 : i32
    %c8_i32_73 = arith.constant 8 : i32
    %271 = arith.muli %c10_i32, %c8_i32_73 : i32
    %272 = tpu.assume_multiple %271, 8 : i32
    %273 = arith.index_cast %272 : i32 to index
    %c0_74 = arith.constant 0 : index
    %274 = vector.load %arg8[%273, %c0_74] : memref<128x128xf32, #tpu.memory_space<vmem>>, vector<8x128xf32>
    %c0_75 = arith.constant 0 : index
    %c0_76 = arith.constant 0 : index
    %275 = vector.load %arg3[%c0_75, %c0_76] : memref<32x128xf32, #tpu.memory_space<vmem>>, vector<32x128xf32>
    %cst_77 = arith.constant dense<0.000000e+00> : vector<8x128xf32>
    %276 = tpu.matmul %268, %275, %cst_77 {dimension_numbers = #tpu.dot_dimension_numbers<[1], [0], [0], [1], [0, 0, 1, 1], [], []>} : vector<8x32xf32>, vector<32x128xf32>, vector<8x128xf32> -> vector<8x128xf32>
    %277 = arith.addf %274, %276 : vector<8x128xf32>
    %278 = vector.broadcast %15 : vector<1x128xf32> to vector<8x128xf32>
    %279 = arith.mulf %277, %278 : vector<8x128xf32>
    %280 = math.tanh %279 : vector<8x128xf32>
    %281 = vector.broadcast %15 : vector<1x128xf32> to vector<8x128xf32>
    %282 = arith.mulf %280, %281 : vector<8x128xf32>
    %283 = vector.broadcast %18 : vector<1x128xf32> to vector<8x128xf32>
    %284 = arith.addf %282, %283 : vector<8x128xf32>
    %285 = vector.extract_strided_slice %284 {offsets = [0, 0], sizes = [8, 32], strides = [1, 1]} : vector<8x128xf32> to vector<8x32xf32>
    %286 = vector.extract_strided_slice %284 {offsets = [0, 32], sizes = [8, 32], strides = [1, 1]} : vector<8x128xf32> to vector<8x32xf32>
    %287 = vector.extract_strided_slice %284 {offsets = [0, 64], sizes = [8, 32], strides = [1, 1]} : vector<8x128xf32> to vector<8x32xf32>
    %288 = vector.extract_strided_slice %284 {offsets = [0, 96], sizes = [8, 32], strides = [1, 1]} : vector<8x128xf32> to vector<8x32xf32>
    %289 = arith.mulf %286, %266 : vector<8x32xf32>
    %290 = arith.mulf %285, %287 : vector<8x32xf32>
    %291 = arith.addf %289, %290 : vector<8x32xf32>
    %292 = math.tanh %291 : vector<8x32xf32>
    %293 = arith.mulf %288, %292 : vector<8x32xf32>
    %294 = arith.index_cast %272 : i32 to index
    %c0_78 = arith.constant 0 : index
    %295 = vector.load %arg9[%294, %c0_78] : memref<128x32xf32, #tpu.memory_space<vmem>>, vector<8x32xf32>
    tpu.vector_store %arg9[%294, %c0_78], %293 {strides = array<i32>} : memref<128x32xf32, #tpu.memory_space<vmem>>, vector<8x32xf32>,
    %c11_i32 = arith.constant 11 : i32
    %c8_i32_79 = arith.constant 8 : i32
    %296 = arith.muli %c11_i32, %c8_i32_79 : i32
    %297 = tpu.assume_multiple %296, 8 : i32
    %298 = arith.index_cast %297 : i32 to index
    %c0_80 = arith.constant 0 : index
    %299 = vector.load %arg8[%298, %c0_80] : memref<128x128xf32, #tpu.memory_space<vmem>>, vector<8x128xf32>
    %c0_81 = arith.constant 0 : index
    %c0_82 = arith.constant 0 : index
    %300 = vector.load %arg3[%c0_81, %c0_82] : memref<32x128xf32, #tpu.memory_space<vmem>>, vector<32x128xf32>
    %cst_83 = arith.constant dense<0.000000e+00> : vector<8x128xf32>
    %301 = tpu.matmul %293, %300, %cst_83 {dimension_numbers = #tpu.dot_dimension_numbers<[1], [0], [0], [1], [0, 0, 1, 1], [], []>} : vector<8x32xf32>, vector<32x128xf32>, vector<8x128xf32> -> vector<8x128xf32>
    %302 = arith.addf %299, %301 : vector<8x128xf32>
    %303 = vector.broadcast %15 : vector<1x128xf32> to vector<8x128xf32>
    %304 = arith.mulf %302, %303 : vector<8x128xf32>
    %305 = math.tanh %304 : vector<8x128xf32>
    %306 = vector.broadcast %15 : vector<1x128xf32> to vector<8x128xf32>
    %307 = arith.mulf %305, %306 : vector<8x128xf32>
    %308 = vector.broadcast %18 : vector<1x128xf32> to vector<8x128xf32>
    %309 = arith.addf %307, %308 : vector<8x128xf32>
    %310 = vector.extract_strided_slice %309 {offsets = [0, 0], sizes = [8, 32], strides = [1, 1]} : vector<8x128xf32> to vector<8x32xf32>
    %311 = vector.extract_strided_slice %309 {offsets = [0, 32], sizes = [8, 32], strides = [1, 1]} : vector<8x128xf32> to vector<8x32xf32>
    %312 = vector.extract_strided_slice %309 {offsets = [0, 64], sizes = [8, 32], strides = [1, 1]} : vector<8x128xf32> to vector<8x32xf32>
    %313 = vector.extract_strided_slice %309 {offsets = [0, 96], sizes = [8, 32], strides = [1, 1]} : vector<8x128xf32> to vector<8x32xf32>
    %314 = arith.mulf %311, %291 : vector<8x32xf32>
    %315 = arith.mulf %310, %312 : vector<8x32xf32>
    %316 = arith.addf %314, %315 : vector<8x32xf32>
    %317 = math.tanh %316 : vector<8x32xf32>
    %318 = arith.mulf %313, %317 : vector<8x32xf32>
    %319 = arith.index_cast %297 : i32 to index
    %c0_84 = arith.constant 0 : index
    %320 = vector.load %arg9[%319, %c0_84] : memref<128x32xf32, #tpu.memory_space<vmem>>, vector<8x32xf32>
    tpu.vector_store %arg9[%319, %c0_84], %318 {strides = array<i32>} : memref<128x32xf32, #tpu.memory_space<vmem>>, vector<8x32xf32>,
    %c12_i32 = arith.constant 12 : i32
    %c8_i32_85 = arith.constant 8 : i32
    %321 = arith.muli %c12_i32, %c8_i32_85 : i32
    %322 = tpu.assume_multiple %321, 8 : i32
    %323 = arith.index_cast %322 : i32 to index
    %c0_86 = arith.constant 0 : index
    %324 = vector.load %arg8[%323, %c0_86] : memref<128x128xf32, #tpu.memory_space<vmem>>, vector<8x128xf32>
    %c0_87 = arith.constant 0 : index
    %c0_88 = arith.constant 0 : index
    %325 = vector.load %arg3[%c0_87, %c0_88] : memref<32x128xf32, #tpu.memory_space<vmem>>, vector<32x128xf32>
    %cst_89 = arith.constant dense<0.000000e+00> : vector<8x128xf32>
    %326 = tpu.matmul %318, %325, %cst_89 {dimension_numbers = #tpu.dot_dimension_numbers<[1], [0], [0], [1], [0, 0, 1, 1], [], []>} : vector<8x32xf32>, vector<32x128xf32>, vector<8x128xf32> -> vector<8x128xf32>
    %327 = arith.addf %324, %326 : vector<8x128xf32>
    %328 = vector.broadcast %15 : vector<1x128xf32> to vector<8x128xf32>
    %329 = arith.mulf %327, %328 : vector<8x128xf32>
    %330 = math.tanh %329 : vector<8x128xf32>
    %331 = vector.broadcast %15 : vector<1x128xf32> to vector<8x128xf32>
    %332 = arith.mulf %330, %331 : vector<8x128xf32>
    %333 = vector.broadcast %18 : vector<1x128xf32> to vector<8x128xf32>
    %334 = arith.addf %332, %333 : vector<8x128xf32>
    %335 = vector.extract_strided_slice %334 {offsets = [0, 0], sizes = [8, 32], strides = [1, 1]} : vector<8x128xf32> to vector<8x32xf32>
    %336 = vector.extract_strided_slice %334 {offsets = [0, 32], sizes = [8, 32], strides = [1, 1]} : vector<8x128xf32> to vector<8x32xf32>
    %337 = vector.extract_strided_slice %334 {offsets = [0, 64], sizes = [8, 32], strides = [1, 1]} : vector<8x128xf32> to vector<8x32xf32>
    %338 = vector.extract_strided_slice %334 {offsets = [0, 96], sizes = [8, 32], strides = [1, 1]} : vector<8x128xf32> to vector<8x32xf32>
    %339 = arith.mulf %336, %316 : vector<8x32xf32>
    %340 = arith.mulf %335, %337 : vector<8x32xf32>
    %341 = arith.addf %339, %340 : vector<8x32xf32>
    %342 = math.tanh %341 : vector<8x32xf32>
    %343 = arith.mulf %338, %342 : vector<8x32xf32>
    %344 = arith.index_cast %322 : i32 to index
    %c0_90 = arith.constant 0 : index
    %345 = vector.load %arg9[%344, %c0_90] : memref<128x32xf32, #tpu.memory_space<vmem>>, vector<8x32xf32>
    tpu.vector_store %arg9[%344, %c0_90], %343 {strides = array<i32>} : memref<128x32xf32, #tpu.memory_space<vmem>>, vector<8x32xf32>,
    %c13_i32 = arith.constant 13 : i32
    %c8_i32_91 = arith.constant 8 : i32
    %346 = arith.muli %c13_i32, %c8_i32_91 : i32
    %347 = tpu.assume_multiple %346, 8 : i32
    %348 = arith.index_cast %347 : i32 to index
    %c0_92 = arith.constant 0 : index
    %349 = vector.load %arg8[%348, %c0_92] : memref<128x128xf32, #tpu.memory_space<vmem>>, vector<8x128xf32>
    %c0_93 = arith.constant 0 : index
    %c0_94 = arith.constant 0 : index
    %350 = vector.load %arg3[%c0_93, %c0_94] : memref<32x128xf32, #tpu.memory_space<vmem>>, vector<32x128xf32>
    %cst_95 = arith.constant dense<0.000000e+00> : vector<8x128xf32>
    %351 = tpu.matmul %343, %350, %cst_95 {dimension_numbers = #tpu.dot_dimension_numbers<[1], [0], [0], [1], [0, 0, 1, 1], [], []>} : vector<8x32xf32>, vector<32x128xf32>, vector<8x128xf32> -> vector<8x128xf32>
    %352 = arith.addf %349, %351 : vector<8x128xf32>
    %353 = vector.broadcast %15 : vector<1x128xf32> to vector<8x128xf32>
    %354 = arith.mulf %352, %353 : vector<8x128xf32>
    %355 = math.tanh %354 : vector<8x128xf32>
    %356 = vector.broadcast %15 : vector<1x128xf32> to vector<8x128xf32>
    %357 = arith.mulf %355, %356 : vector<8x128xf32>
    %358 = vector.broadcast %18 : vector<1x128xf32> to vector<8x128xf32>
    %359 = arith.addf %357, %358 : vector<8x128xf32>
    %360 = vector.extract_strided_slice %359 {offsets = [0, 0], sizes = [8, 32], strides = [1, 1]} : vector<8x128xf32> to vector<8x32xf32>
    %361 = vector.extract_strided_slice %359 {offsets = [0, 32], sizes = [8, 32], strides = [1, 1]} : vector<8x128xf32> to vector<8x32xf32>
    %362 = vector.extract_strided_slice %359 {offsets = [0, 64], sizes = [8, 32], strides = [1, 1]} : vector<8x128xf32> to vector<8x32xf32>
    %363 = vector.extract_strided_slice %359 {offsets = [0, 96], sizes = [8, 32], strides = [1, 1]} : vector<8x128xf32> to vector<8x32xf32>
    %364 = arith.mulf %361, %341 : vector<8x32xf32>
    %365 = arith.mulf %360, %362 : vector<8x32xf32>
    %366 = arith.addf %364, %365 : vector<8x32xf32>
    %367 = math.tanh %366 : vector<8x32xf32>
    %368 = arith.mulf %363, %367 : vector<8x32xf32>
    %369 = arith.index_cast %347 : i32 to index
    %c0_96 = arith.constant 0 : index
    %370 = vector.load %arg9[%369, %c0_96] : memref<128x32xf32, #tpu.memory_space<vmem>>, vector<8x32xf32>
    tpu.vector_store %arg9[%369, %c0_96], %368 {strides = array<i32>} : memref<128x32xf32, #tpu.memory_space<vmem>>, vector<8x32xf32>,
    %c14_i32 = arith.constant 14 : i32
    %c8_i32_97 = arith.constant 8 : i32
    %371 = arith.muli %c14_i32, %c8_i32_97 : i32
    %372 = tpu.assume_multiple %371, 8 : i32
    %373 = arith.index_cast %372 : i32 to index
    %c0_98 = arith.constant 0 : index
    %374 = vector.load %arg8[%373, %c0_98] : memref<128x128xf32, #tpu.memory_space<vmem>>, vector<8x128xf32>
    %c0_99 = arith.constant 0 : index
    %c0_100 = arith.constant 0 : index
    %375 = vector.load %arg3[%c0_99, %c0_100] : memref<32x128xf32, #tpu.memory_space<vmem>>, vector<32x128xf32>
    %cst_101 = arith.constant dense<0.000000e+00> : vector<8x128xf32>
    %376 = tpu.matmul %368, %375, %cst_101 {dimension_numbers = #tpu.dot_dimension_numbers<[1], [0], [0], [1], [0, 0, 1, 1], [], []>} : vector<8x32xf32>, vector<32x128xf32>, vector<8x128xf32> -> vector<8x128xf32>
    %377 = arith.addf %374, %376 : vector<8x128xf32>
    %378 = vector.broadcast %15 : vector<1x128xf32> to vector<8x128xf32>
    %379 = arith.mulf %377, %378 : vector<8x128xf32>
    %380 = math.tanh %379 : vector<8x128xf32>
    %381 = vector.broadcast %15 : vector<1x128xf32> to vector<8x128xf32>
    %382 = arith.mulf %380, %381 : vector<8x128xf32>
    %383 = vector.broadcast %18 : vector<1x128xf32> to vector<8x128xf32>
    %384 = arith.addf %382, %383 : vector<8x128xf32>
    %385 = vector.extract_strided_slice %384 {offsets = [0, 0], sizes = [8, 32], strides = [1, 1]} : vector<8x128xf32> to vector<8x32xf32>
    %386 = vector.extract_strided_slice %384 {offsets = [0, 32], sizes = [8, 32], strides = [1, 1]} : vector<8x128xf32> to vector<8x32xf32>
    %387 = vector.extract_strided_slice %384 {offsets = [0, 64], sizes = [8, 32], strides = [1, 1]} : vector<8x128xf32> to vector<8x32xf32>
    %388 = vector.extract_strided_slice %384 {offsets = [0, 96], sizes = [8, 32], strides = [1, 1]} : vector<8x128xf32> to vector<8x32xf32>
    %389 = arith.mulf %386, %366 : vector<8x32xf32>
    %390 = arith.mulf %385, %387 : vector<8x32xf32>
    %391 = arith.addf %389, %390 : vector<8x32xf32>
    %392 = math.tanh %391 : vector<8x32xf32>
    %393 = arith.mulf %388, %392 : vector<8x32xf32>
    %394 = arith.index_cast %372 : i32 to index
    %c0_102 = arith.constant 0 : index
    %395 = vector.load %arg9[%394, %c0_102] : memref<128x32xf32, #tpu.memory_space<vmem>>, vector<8x32xf32>
    tpu.vector_store %arg9[%394, %c0_102], %393 {strides = array<i32>} : memref<128x32xf32, #tpu.memory_space<vmem>>, vector<8x32xf32>,
    %c15_i32 = arith.constant 15 : i32
    %c8_i32_103 = arith.constant 8 : i32
    %396 = arith.muli %c15_i32, %c8_i32_103 : i32
    %397 = tpu.assume_multiple %396, 8 : i32
    %398 = arith.index_cast %397 : i32 to index
    %c0_104 = arith.constant 0 : index
    %399 = vector.load %arg8[%398, %c0_104] : memref<128x128xf32, #tpu.memory_space<vmem>>, vector<8x128xf32>
    %c0_105 = arith.constant 0 : index
    %c0_106 = arith.constant 0 : index
    %400 = vector.load %arg3[%c0_105, %c0_106] : memref<32x128xf32, #tpu.memory_space<vmem>>, vector<32x128xf32>
    %cst_107 = arith.constant dense<0.000000e+00> : vector<8x128xf32>
    %401 = tpu.matmul %393, %400, %cst_107 {dimension_numbers = #tpu.dot_dimension_numbers<[1], [0], [0], [1], [0, 0, 1, 1], [], []>} : vector<8x32xf32>, vector<32x128xf32>, vector<8x128xf32> -> vector<8x128xf32>
    %402 = arith.addf %399, %401 : vector<8x128xf32>
    %403 = vector.broadcast %15 : vector<1x128xf32> to vector<8x128xf32>
    %404 = arith.mulf %402, %403 : vector<8x128xf32>
    %405 = math.tanh %404 : vector<8x128xf32>
    %406 = vector.broadcast %15 : vector<1x128xf32> to vector<8x128xf32>
    %407 = arith.mulf %405, %406 : vector<8x128xf32>
    %408 = vector.broadcast %18 : vector<1x128xf32> to vector<8x128xf32>
    %409 = arith.addf %407, %408 : vector<8x128xf32>
    %410 = vector.extract_strided_slice %409 {offsets = [0, 0], sizes = [8, 32], strides = [1, 1]} : vector<8x128xf32> to vector<8x32xf32>
    %411 = vector.extract_strided_slice %409 {offsets = [0, 32], sizes = [8, 32], strides = [1, 1]} : vector<8x128xf32> to vector<8x32xf32>
    %412 = vector.extract_strided_slice %409 {offsets = [0, 64], sizes = [8, 32], strides = [1, 1]} : vector<8x128xf32> to vector<8x32xf32>
    %413 = vector.extract_strided_slice %409 {offsets = [0, 96], sizes = [8, 32], strides = [1, 1]} : vector<8x128xf32> to vector<8x32xf32>
    %414 = arith.mulf %411, %391 : vector<8x32xf32>
    %415 = arith.mulf %410, %412 : vector<8x32xf32>
    %416 = arith.addf %414, %415 : vector<8x32xf32>
    %417 = math.tanh %416 : vector<8x32xf32>
    %418 = arith.mulf %413, %417 : vector<8x32xf32>
    %419 = arith.index_cast %397 : i32 to index
    %c0_108 = arith.constant 0 : index
    %420 = vector.load %arg9[%419, %c0_108] : memref<128x32xf32, #tpu.memory_space<vmem>>, vector<8x32xf32>
    tpu.vector_store %arg9[%419, %c0_108], %418 {strides = array<i32>} : memref<128x32xf32, #tpu.memory_space<vmem>>, vector<8x32xf32>,
    %c16_i32 = arith.constant 16 : i32
    %c0_109 = arith.constant 0 : index
    %c0_110 = arith.constant 0 : index
    %421 = vector.load %arg4[%c0_109, %c0_110] : memref<8x128xf32, #tpu.memory_space<vmem>>, vector<8x128xf32>
    %c0_111 = arith.constant 0 : index
    %c0_112 = arith.constant 0 : index
    %422 = vector.load %arg9[%c0_111, %c0_112] : memref<128x32xf32, #tpu.memory_space<vmem>>, vector<128x32xf32>
    %cst_113 = arith.constant dense<0.000000e+00> : vector<8x32xf32>
    %423 = tpu.matmul %421, %422, %cst_113 {dimension_numbers = #tpu.dot_dimension_numbers<[1], [0], [0], [1], [0, 0, 1, 1], [], []>} : vector<8x128xf32>, vector<128x32xf32>, vector<8x32xf32> -> vector<8x32xf32>
    %c0_114 = arith.constant 0 : index
    %c0_115 = arith.constant 0 : index
    %424 = vector.load %arg5[%c0_114, %c0_115] : memref<32x20xf32, #tpu.memory_space<vmem>>, vector<32x20xf32>
    %cst_116 = arith.constant dense<0.000000e+00> : vector<8x20xf32>
    %425 = tpu.matmul %423, %424, %cst_116 {dimension_numbers = #tpu.dot_dimension_numbers<[1], [0], [0], [1], [0, 0, 1, 1], [], []>} : vector<8x32xf32>, vector<32x20xf32>, vector<8x20xf32> -> vector<8x20xf32>
    %c0_117 = arith.constant 0 : index
    %c0_118 = arith.constant 0 : index
    %426 = vector.load %arg6[%c0_117, %c0_118] : memref<1x20xf32, #tpu.memory_space<vmem>>, vector<1x20xf32>
    %427 = vector.broadcast %426 : vector<1x20xf32> to vector<8x20xf32>
    %428 = arith.addf %425, %427 : vector<8x20xf32>
    %cst_119 = arith.constant dense<0xFF800000> : vector<8xf32>
    %429 = vector.multi_reduction <maximumf>, %428, %cst_119 [1] : vector<8x20xf32> to vector<8xf32>
    %430 = vector.shape_cast %429 : vector<8xf32> to vector<8x1xf32>
    %431 = vector.broadcast %430 : vector<8x1xf32> to vector<8x20xf32>
    %432 = arith.subf %428, %431 : vector<8x20xf32>
    %433 = math.exp %432 : vector<8x20xf32>
    %434 = vector.broadcast %430 : vector<8x1xf32> to vector<8x20xf32>
    %435 = arith.subf %428, %434 : vector<8x20xf32>
    %cst_120 = arith.constant dense<0.000000e+00> : vector<8xf32>
    %436 = vector.multi_reduction <add>, %433, %cst_120 [1] : vector<8x20xf32> to vector<8xf32>
    %437 = vector.shape_cast %436 : vector<8xf32> to vector<8x1xf32>
    %438 = math.log %437 : vector<8x1xf32>
    %439 = vector.broadcast %438 : vector<8x1xf32> to vector<8x20xf32>
    %440 = arith.subf %435, %439 : vector<8x20xf32>
    %c0_121 = arith.constant 0 : index
    %c0_122 = arith.constant 0 : index
    %441 = vector.load %arg7[%c0_121, %c0_122] : memref<8x20xf32, #tpu.memory_space<vmem>>, vector<8x20xf32>
    tpu.vector_store %arg7[%c0_121, %c0_122], %440 {strides = array<i32>} : memref<8x20xf32, #tpu.memory_space<vmem>>, vector<8x20xf32>,
    return
  }
}

</mosaic_0001>

<llo_original>
// kernel: lstm_classifier_forward.1
$region0: #{lstm_classifier_forward.1}
  #allocation0 [shape = 'u32[]', space=smem, size = 0x4, offset = 0x4, fixed_abs, tag = 'smem constant byte address 0x4 - core index']
  #allocation1 [shape = 'u32[144,128]{1,0:T(1,128)}', space=vmem, size = 0x12000, scoped, tag = 'internal scratch']
  #allocation2 [shape = 'f32[128,128]{1,0:T(8,128)}', space=vmem, size = 0x10000, scoped, tag = 'scratch operand']
  #allocation3 [shape = 'f32[128,32]{1,0:T(8,128)}', space=vmem, size = 0x10000, scoped, tag = 'scratch operand']
  %s0 = inlined_call_operand.vmem [shape: f32[128,128], index: 0, kind: input, shape index: {}]
  %s1 = inlined_call_operand.vmem [shape: f32[128,128], index: 1, kind: input, shape index: {}]
  %s2 = inlined_call_operand.vmem [shape: f32[1,128], index: 2, kind: input, shape index: {}]
  %s3 = inlined_call_operand.vmem [shape: f32[32,128], index: 3, kind: input, shape index: {}]
  %s4 = inlined_call_operand.vmem [shape: f32[8,128], index: 4, kind: input, shape index: {}]
  %s5 = inlined_call_operand.vmem [shape: f32[32,20], index: 5, kind: input, shape index: {}]
  %s6 = inlined_call_operand.vmem [shape: f32[1,20], index: 6, kind: input, shape index: {}]
  %s7 = inlined_call_operand.hbm [shape: f32[8,20], index: 7, kind: output, shape index: {}]
  %s8 = sld [smem:[#allocation0]]
  $region38: #{lstm_classifier_forward.1} parent=0
    _
  %s10 = ssub.s32 1, %s8
  %s11 = scalar_select 0, %s10, %s8
  $region1: #{lstm_classifier_forward.1} parent=0
    #allocation4 [shape = 'u8[4096]{0}', space=vmem, size = 0x1000, scoped, tag = 'output window, operand 0, single buffered']
    #allocation5 [shape = 's32[1]{0}', space=sflag, size = 0x4, scoped, tag = 'scoped memory for lstm_classifier_forward.1']
    %12 = vsyncpa [#allocation5], 0
    // Predicated region
    $region2: #{lstm_classifier_forward.1} parent=1 // pred_check
      _
    $region3: #{lstm_classifier_forward.1} parent=1 // pred_check_branch
      %14 = sbr.rel (0) target = $region5
    $region4: #{lstm_classifier_forward.1} parent=1 // pred_region
      _
    $region5: #{lstm_classifier_forward.1} parent=1 // pred_fallthru
      _
    // Predicated region
    $region6: #{lstm_classifier_forward.1} parent=1 // pred_check
      _
    $region7: #{lstm_classifier_forward.1} parent=1 // pred_check_branch
      %16 = sbr.rel (0) target = $region9
    $region8: #{lstm_classifier_forward.1} parent=1 // pred_region
      _
    $region9: #{lstm_classifier_forward.1} parent=1 // pred_fallthru
      _
    // Predicated region
    $region10: #{lstm_classifier_forward.1} parent=1 // pred_check
      _
    $region11: #{lstm_classifier_forward.1} parent=1 // pred_check_branch
      %18 = sbr.rel (0) target = $region13
    $region12: #{lstm_classifier_forward.1} parent=1 // pred_region
      _
    $region13: #{lstm_classifier_forward.1} parent=1 // pred_fallthru
      _
    // Predicated region
    $region14: #{lstm_classifier_forward.1} parent=1 // pred_check
      _
    $region15: #{lstm_classifier_forward.1} parent=1 // pred_check_branch
      %20 = sbr.rel (0) target = $region17
    $region16: #{lstm_classifier_forward.1} parent=1 // pred_region
      _
    $region17: #{lstm_classifier_forward.1} parent=1 // pred_fallthru
      _
    // Predicated region
    $region18: #{lstm_classifier_forward.1} parent=1 // pred_check
      _
    $region19: #{lstm_classifier_forward.1} parent=1 // pred_check_branch
      %22 = sbr.rel (0) target = $region21
    $region20: #{lstm_classifier_forward.1} parent=1 // pred_region
      _
    $region21: #{lstm_classifier_forward.1} parent=1 // pred_fallthru
      _
    // Predicated region
    $region22: #{lstm_classifier_forward.1} parent=1 // pred_check
      _
    $region23: #{lstm_classifier_forward.1} parent=1 // pred_check_branch
      %24 = sbr.rel (0) target = $region25
    $region24: #{lstm_classifier_forward.1} parent=1 // pred_region
      _
    $region25: #{lstm_classifier_forward.1} parent=1 // pred_fallthru
      _
    // Predicated region
    $region26: #{lstm_classifier_forward.1} parent=1 // pred_check
      _
    $region27: #{lstm_classifier_forward.1} parent=1 // pred_check_branch
      %26 = sbr.rel (0) target = $region29
    $region28: #{lstm_classifier_forward.1} parent=1 // pred_region
      _
    $region29: #{lstm_classifier_forward.1} parent=1 // pred_fallthru
      _
    %v27 = vld [vmem:[%s0] sm:$0xff]
    %v28 = vld [vmem:[%s0 + $0x8] sm:$0xff]
    %v29 = vld [vmem:[%s0 + $0x10] sm:$0xff]
    %v30 = vld [vmem:[%s0 + $0x18] sm:$0xff]
    %v31 = vld [vmem:[%s0 + $0x20] sm:$0xff]
    %v32 = vld [vmem:[%s0 + $0x28] sm:$0xff]
    %v33 = vld [vmem:[%s0 + $0x30] sm:$0xff]
    %v34 = vld [vmem:[%s0 + $0x38] sm:$0xff]
    %v35 = vld [vmem:[%s0 + $0x40] sm:$0xff]
    %v36 = vld [vmem:[%s0 + $0x48] sm:$0xff]
    %v37 = vld [vmem:[%s0 + $0x50] sm:$0xff]
    %v38 = vld [vmem:[%s0 + $0x58] sm:$0xff]
    %v39 = vld [vmem:[%s0 + $0x60] sm:$0xff]
    %v40 = vld [vmem:[%s0 + $0x68] sm:$0xff]
    %v41 = vld [vmem:[%s0 + $0x70] sm:$0xff]
    %v42 = vld [vmem:[%s0 + $0x78] sm:$0xff]
    %v43 = vld [vmem:[%s1] sm:$0xff]
    %v44 = vld [vmem:[%s1 + $0x8] sm:$0xff]
    %v45 = vld [vmem:[%s1 + $0x10] sm:$0xff]
    %v46 = vld [vmem:[%s1 + $0x18] sm:$0xff]
    %v47 = vld [vmem:[%s1 + $0x20] sm:$0xff]
    %v48 = vld [vmem:[%s1 + $0x28] sm:$0xff]
    %v49 = vld [vmem:[%s1 + $0x30] sm:$0xff]
    %v50 = vld [vmem:[%s1 + $0x38] sm:$0xff]
    %v51 = vld [vmem:[%s1 + $0x40] sm:$0xff]
    %v52 = vld [vmem:[%s1 + $0x48] sm:$0xff]
    %v53 = vld [vmem:[%s1 + $0x50] sm:$0xff]
    %v54 = vld [vmem:[%s1 + $0x58] sm:$0xff]
    %v55 = vld [vmem:[%s1 + $0x60] sm:$0xff]
    %v56 = vld [vmem:[%s1 + $0x68] sm:$0xff]
    %v57 = vld [vmem:[%s1 + $0x70] sm:$0xff]
    %v58 = vld [vmem:[%s1 + $0x78] sm:$0xff]
    %v59 = vld [vmem:[%s2] sm:$0x1]
    %v61 = vlaneseq
    %v62 = vshrl.u32 %v61, 7
    %v63 = vsub.s32 0, %v62
    %v64 = vrot.slane %v59, %v63
    %66 = vmatprep.subr.mxu0 0.0
    %67 = vmatpush1.msra.mxu0 %v58
    %68 = vmatprep.subr.mxu0 0.0
    %69 = vmatpush1.msra.mxu0 %v57
    %70 = vmatprep.subr.mxu0 0.0
    %71 = vmatpush1.msra.mxu0 %v56
    %72 = vmatprep.subr.mxu0 0.0
    %73 = vmatpush1.msra.mxu0 %v55
    %74 = vmatprep.subr.mxu0 0.0
    %75 = vmatpush1.msra.mxu0 %v54
    %76 = vmatprep.subr.mxu0 0.0
    %77 = vmatpush1.msra.mxu0 %v53
    %78 = vmatprep.subr.mxu0 0.0
    %79 = vmatpush1.msra.mxu0 %v52
    %80 = vmatprep.subr.mxu0 0.0
    %81 = vmatpush1.msra.mxu0 %v51
    %82 = vmatprep.subr.mxu0 0.0
    %83 = vmatpush1.msra.mxu0 %v50
    %84 = vmatprep.subr.mxu0 0.0
    %85 = vmatpush1.msra.mxu0 %v49
    %86 = vmatprep.subr.mxu0 0.0
    %87 = vmatpush1.msra.mxu0 %v48
    %88 = vmatprep.subr.mxu0 0.0
    %89 = vmatpush1.msra.mxu0 %v47
    %90 = vmatprep.subr.mxu0 0.0
    %91 = vmatpush1.msra.mxu0 %v46
    %92 = vmatprep.subr.mxu0 0.0
    %93 = vmatpush1.msra.mxu0 %v45
    %94 = vmatprep.subr.mxu0 0.0
    %95 = vmatpush1.msra.mxu0 %v44
    %96 = vmatprep.subr.mxu0 0.0
    %97 = vmatpush1.msra.mxu0 %v43
    %98 = vmatprep.subr.mxu0 0.0
    %99 = vmatpush2.msra.mxu0 0.0
    %100 = vmatprep.subr.mxu0 0.0
    %101 = vmatpush2.msra.mxu0 0.0
    %102 = vmatprep.subr.mxu0 0.0
    %103 = vmatpush2.msra.mxu0 0.0
    %104 = vmatprep.subr.mxu0 0.0
    %105 = vmatpush2.msra.mxu0 0.0
    %106 = vmatprep.subr.mxu0 0.0
    %107 = vmatpush2.msra.mxu0 0.0
    %108 = vmatprep.subr.mxu0 0.0
    %109 = vmatpush2.msra.mxu0 0.0
    %110 = vmatprep.subr.mxu0 0.0
    %111 = vmatpush2.msra.mxu0 0.0
    %112 = vmatprep.subr.mxu0 0.0
    %113 = vmatpush2.msra.mxu0 0.0
    %114 = vmatprep.subr.mxu0 0.0
    %115 = vmatpush2.msra.mxu0 0.0
    %116 = vmatprep.subr.mxu0 0.0
    %117 = vmatpush2.msra.mxu0 0.0
    %118 = vmatprep.subr.mxu0 0.0
    %119 = vmatpush2.msra.mxu0 0.0
    %120 = vmatprep.subr.mxu0 0.0
    %121 = vmatpush2.msra.mxu0 0.0
    %122 = vmatprep.subr.mxu0 0.0
    %123 = vmatpush2.msra.mxu0 0.0
    %124 = vmatprep.subr.mxu0 0.0
    %125 = vmatpush2.msra.mxu0 0.0
    %126 = vmatprep.subr.mxu0 0.0
    %127 = vmatpush2.msra.mxu0 0.0
    %128 = vmatprep.subr.mxu0 0.0
    %129 = vmatpush2.msra.mxu0 0.0
    %130 = vmatprep.mubr.f32.mxu0 0.0
    %131 = vmatmul.mubr.f32.gmra.mxu0 %v27
    %v132 = vpop.f32.mrf.mxu0
    %v133 = vadd.f32 %v64, %v132
    %v134 = vpop.f32.mrf.mxu0
    %135 = vmatprep.mubr.f32.mxu0 0.0
    %136 = vmatmul.mubr.f32.gmra.mxu0 %v28
    %v137 = vpop.f32.mrf.mxu0
    %v138 = vadd.f32 %v64, %v137
    %v139 = vpop.f32.mrf.mxu0
    %140 = vmatprep.mubr.f32.mxu0 0.0
    %141 = vmatmul.mubr.f32.gmra.mxu0 %v29
    %v142 = vpop.f32.mrf.mxu0
    %v143 = vadd.f32 %v64, %v142
    %v144 = vpop.f32.mrf.mxu0
    %145 = vmatprep.mubr.f32.mxu0 0.0
    %146 = vmatmul.mubr.f32.gmra.mxu0 %v30
    %v147 = vpop.f32.mrf.mxu0
    %v148 = vadd.f32 %v64, %v147
    %v149 = vpop.f32.mrf.mxu0
    %150 = vmatprep.mubr.f32.mxu0 0.0
    %151 = vmatmul.mubr.f32.gmra.mxu0 %v31
    %v152 = vpop.f32.mrf.mxu0
    %v153 = vadd.f32 %v64, %v152
    %v154 = vpop.f32.mrf.mxu0
    %155 = vmatprep.mubr.f32.mxu0 0.0
    %156 = vmatmul.mubr.f32.gmra.mxu0 %v32
    %v157 = vpop.f32.mrf.mxu0
    %v158 = vadd.f32 %v64, %v157
    %v159 = vpop.f32.mrf.mxu0
    %160 = vmatprep.mubr.f32.mxu0 0.0
    %161 = vmatmul.mubr.f32.gmra.mxu0 %v33
    %v162 = vpop.f32.mrf.mxu0
    %v163 = vadd.f32 %v64, %v162
    %v164 = vpop.f32.mrf.mxu0
    %165 = vmatprep.mubr.f32.mxu0 0.0
    %166 = vmatmul.mubr.f32.gmra.mxu0 %v34
    %v167 = vpop.f32.mrf.mxu0
    %v168 = vadd.f32 %v64, %v167
    %v169 = vpop.f32.mrf.mxu0
    %170 = vmatprep.mubr.f32.mxu0 0.0
    %171 = vmatmul.mubr.f32.gmra.mxu0 %v35
    %v172 = vpop.f32.mrf.mxu0
    %v173 = vadd.f32 %v64, %v172
    %v174 = vpop.f32.mrf.mxu0
    %175 = vmatprep.mubr.f32.mxu0 0.0
    %176 = vmatmul.mubr.f32.gmra.mxu0 %v36
    %v177 = vpop.f32.mrf.mxu0
    %v178 = vadd.f32 %v64, %v177
    %v179 = vpop.f32.mrf.mxu0
    %180 = vmatprep.mubr.f32.mxu0 0.0
    %181 = vmatmul.mubr.f32.gmra.mxu0 %v37
    %v182 = vpop.f32.mrf.mxu0
    %v183 = vadd.f32 %v64, %v182
    %v184 = vpop.f32.mrf.mxu0
    %185 = vmatprep.mubr.f32.mxu0 0.0
    %186 = vmatmul.mubr.f32.gmra.mxu0 %v38
    %v187 = vpop.f32.mrf.mxu0
    %v188 = vadd.f32 %v64, %v187
    %v189 = vpop.f32.mrf.mxu0
    %190 = vmatprep.mubr.f32.mxu0 0.0
    %191 = vmatmul.mubr.f32.gmra.mxu0 %v39
    %v192 = vpop.f32.mrf.mxu0
    %v193 = vadd.f32 %v64, %v192
    %v194 = vpop.f32.mrf.mxu0
    %195 = vmatprep.mubr.f32.mxu0 0.0
    %196 = vmatmul.mubr.f32.gmra.mxu0 %v40
    %v197 = vpop.f32.mrf.mxu0
    %v198 = vadd.f32 %v64, %v197
    %v199 = vpop.f32.mrf.mxu0
    %200 = vmatprep.mubr.f32.mxu0 0.0
    %201 = vmatmul.mubr.f32.gmra.mxu0 %v41
    %v202 = vpop.f32.mrf.mxu0
    %v203 = vadd.f32 %v64, %v202
    %v204 = vpop.f32.mrf.mxu0
    %205 = vmatprep.mubr.f32.mxu0 0.0
    %206 = vmatmul.mubr.f32.gmra.mxu0 %v42
    %v207 = vpop.f32.mrf.mxu0
    %v208 = vadd.f32 %v64, %v207
    %v209 = vpop.f32.mrf.mxu0
    %210 = vdwg.mxu0
    %211 = vst [vmem:[#allocation2] sm:$0xff] %v133
    %212 = vst [vmem:[#allocation2 + $0x8] sm:$0xff] %v138
    %213 = vst [vmem:[#allocation2 + $0x10] sm:$0xff] %v143
    %214 = vst [vmem:[#allocation2 + $0x18] sm:$0xff] %v148
    %215 = vst [vmem:[#allocation2 + $0x20] sm:$0xff] %v153
    %216 = vst [vmem:[#allocation2 + $0x28] sm:$0xff] %v158
    %217 = vst [vmem:[#allocation2 + $0x30] sm:$0xff] %v163
    %218 = vst [vmem:[#allocation2 + $0x38] sm:$0xff] %v168
    %219 = vst [vmem:[#allocation2 + $0x40] sm:$0xff] %v173
    %220 = vst [vmem:[#allocation2 + $0x48] sm:$0xff] %v178
    %221 = vst [vmem:[#allocation2 + $0x50] sm:$0xff] %v183
    %222 = vst [vmem:[#allocation2 + $0x58] sm:$0xff] %v188
    %223 = vst [vmem:[#allocation2 + $0x60] sm:$0xff] %v193
    %224 = vst [vmem:[#allocation2 + $0x68] sm:$0xff] %v198
    %225 = vst [vmem:[#allocation2 + $0x70] sm:$0xff] %v203
    %226 = vst [vmem:[#allocation2 + $0x78] sm:$0xff] %v208
    %v227 = vlaneseq
    %v228 = vand.u32 %v227, 127
    %vm229 = vcmp.ge.s32.totalorder %v228, 64
    %vm230 = vcmp.lt.s32.totalorder %v228, 96
    %vm231 = vmand %vm229, %vm230
    %v232 = vsel %vm231, 1.0, 0.5
    %v233 = vsel %vm231, 0.0, 0.5
    %v234 = vld [vmem:[#allocation2] sm:$0xff]
    %v235 = vld [vmem:[%s3] sm:$0xff]
    %v236 = vld [vmem:[%s3 + $0x8] sm:$0xff]
    %v237 = vld [vmem:[%s3 + $0x10] sm:$0xff]
    %v238 = vld [vmem:[%s3 + $0x18] sm:$0xff]
    %vm239 = vcmask 261120
    %v241 = vsel %vm239, 0.0, 0
    %243 = vmatprep.subr.mxu0 0.0
    %244 = vmatpush1.msra.mxu0 0.0
    %245 = vmatprep.subr.mxu0 0.0
    %246 = vmatpush1.msra.mxu0 0.0
    %247 = vmatprep.subr.mxu0 0.0
    %248 = vmatpush1.msra.mxu0 0.0
    %249 = vmatprep.subr.mxu0 0.0
    %250 = vmatpush1.msra.mxu0 0.0
    %251 = vmatprep.subr.mxu0 0.0
    %252 = vmatpush1.msra.mxu0 0.0
    %253 = vmatprep.subr.mxu0 0.0
    %254 = vmatpush1.msra.mxu0 0.0
    %255 = vmatprep.subr.mxu0 0.0
    %256 = vmatpush1.msra.mxu0 0.0
    %257 = vmatprep.subr.mxu0 0.0
    %258 = vmatpush1.msra.mxu0 0.0
    %259 = vmatprep.subr.mxu0 0.0
    %260 = vmatpush1.msra.mxu0 0.0
    %261 = vmatprep.subr.mxu0 0.0
    %262 = vmatpush1.msra.mxu0 0.0
    %263 = vmatprep.subr.mxu0 0.0
    %264 = vmatpush1.msra.mxu0 0.0
    %265 = vmatprep.subr.mxu0 0.0
    %266 = vmatpush1.msra.mxu0 0.0
    %267 = vmatprep.subr.mxu0 0.0
    %268 = vmatpush1.msra.mxu0 %v238
    %269 = vmatprep.subr.mxu0 0.0
    %270 = vmatpush1.msra.mxu0 %v237
    %271 = vmatprep.subr.mxu0 0.0
    %272 = vmatpush1.msra.mxu0 %v236
    %273 = vmatprep.subr.mxu0 0.0
    %274 = vmatpush1.msra.mxu0 %v235
    %275 = vmatprep.subr.mxu0 0.0
    %276 = vmatpush2.msra.mxu0 0.0
    %277 = vmatprep.subr.mxu0 0.0
    %278 = vmatpush2.msra.mxu0 0.0
    %279 = vmatprep.subr.mxu0 0.0
    %280 = vmatpush2.msra.mxu0 0.0
    %281 = vmatprep.subr.mxu0 0.0
    %282 = vmatpush2.msra.mxu0 0.0
    %283 = vmatprep.subr.mxu0 0.0
    %284 = vmatpush2.msra.mxu0 0.0
    %285 = vmatprep.subr.mxu0 0.0
    %286 = vmatpush2.msra.mxu0 0.0
    %287 = vmatprep.subr.mxu0 0.0
    %288 = vmatpush2.msra.mxu0 0.0
    %289 = vmatprep.subr.mxu0 0.0
    %290 = vmatpush2.msra.mxu0 0.0
    %291 = vmatprep.subr.mxu0 0.0
    %292 = vmatpush2.msra.mxu0 0.0
    %293 = vmatprep.subr.mxu0 0.0
    %294 = vmatpush2.msra.mxu0 0.0
    %295 = vmatprep.subr.mxu0 0.0
    %296 = vmatpush2.msra.mxu0 0.0
    %297 = vmatprep.subr.mxu0 0.0
    %298 = vmatpush2.msra.mxu0 0.0
    %299 = vmatprep.subr.mxu0 0.0
    %300 = vmatpush2.msra.mxu0 0.0
    %301 = vmatprep.subr.mxu0 0.0
    %302 = vmatpush2.msra.mxu0 0.0
    %303 = vmatprep.subr.mxu0 0.0
    %304 = vmatpush2.msra.mxu0 0.0
    %305 = vmatprep.subr.mxu0 0.0
    %306 = vmatpush2.msra.mxu0 0.0
    %307 = vmatprep.mubr.f32.mxu0 0.0
    %308 = vmatmul.mubr.f32.gmra.mxu0 %v241
    %v309 = vpop.f32.mrf.mxu0
    %v310 = vadd.f32 0.0, %v309
    %v311 = vpop.f32.mrf.mxu0
    %312 = vdwg.mxu0
    %v313 = vadd.f32 %v234, %v310
    %v314 = vmul.f32 %v313, %v232
    %v315 = vtanh.pop %v314
    %v316 = vmul.f32 %v315, %v232
    %v317 = vadd.f32 %v316, %v233
    %v318 = vmul.f32 %v317, 0.0
    %320 = vrot.lane.b32.xlu0 %v317, 64
    %v321 = vpop.permute.xlu0 %320
    %v323 = vmul.f32 %v317, %v321
    %325 = vrot.lane.b32.xlu0 %v323, 32
    %v326 = vpop.permute.xlu0 %325
    %v328 = vadd.f32 %v318, %v326
    %v329 = vtanh.pop %v328
    %331 = vrot.lane.b32.xlu0 %v329, 64
    %v332 = vpop.permute.xlu0 %331
    %v334 = vmul.f32 %v317, %v332
    %336 = vrot.lane.b32.xlu0 %v334, 32
    %v337 = vpop.permute.xlu0 %336
    %339 = vst.msk [vmem:[#allocation3] sm:$0xff] %vm239, %v337
    %s340 = scalar_lea.vmem [#allocation2], 8
    %v341 = vld [vmem:[%s340] sm:$0xff]
    %v342 = vld [vmem:[%s3] sm:$0xff]
    %v343 = vld [vmem:[%s3 + $0x8] sm:$0xff]
    %v344 = vld [vmem:[%s3 + $0x10] sm:$0xff]
    %v345 = vld [vmem:[%s3 + $0x18] sm:$0xff]
    %v346 = vsel %vm239, %v337, 0
    %348 = vmatprep.subr.mxu0 0.0
    %349 = vmatpush1.msra.mxu0 0.0
    %350 = vmatprep.subr.mxu0 0.0
    %351 = vmatpush1.msra.mxu0 0.0
    %352 = vmatprep.subr.mxu0 0.0
    %353 = vmatpush1.msra.mxu0 0.0
    %354 = vmatprep.subr.mxu0 0.0
    %355 = vmatpush1.msra.mxu0 0.0
    %356 = vmatprep.subr.mxu0 0.0
    %357 = vmatpush1.msra.mxu0 0.0
    %358 = vmatprep.subr.mxu0 0.0
    %359 = vmatpush1.msra.mxu0 0.0
    %360 = vmatprep.subr.mxu0 0.0
    %361 = vmatpush1.msra.mxu0 0.0
    %362 = vmatprep.subr.mxu0 0.0
    %363 = vmatpush1.msra.mxu0 0.0
    %364 = vmatprep.subr.mxu0 0.0
    %365 = vmatpush1.msra.mxu0 0.0
    %366 = vmatprep.subr.mxu0 0.0
    %367 = vmatpush1.msra.mxu0 0.0
    %368 = vmatprep.subr.mxu0 0.0
    %369 = vmatpush1.msra.mxu0 0.0
    %370 = vmatprep.subr.mxu0 0.0
    %371 = vmatpush1.msra.mxu0 0.0
    %372 = vmatprep.subr.mxu0 0.0
    %373 = vmatpush1.msra.mxu0 %v345
    %374 = vmatprep.subr.mxu0 0.0
    %375 = vmatpush1.msra.mxu0 %v344
    %376 = vmatprep.subr.mxu0 0.0
    %377 = vmatpush1.msra.mxu0 %v343
    %378 = vmatprep.subr.mxu0 0.0
    %379 = vmatpush1.msra.mxu0 %v342
    %380 = vmatprep.subr.mxu0 0.0
    %381 = vmatpush2.msra.mxu0 0.0
    %382 = vmatprep.subr.mxu0 0.0
    %383 = vmatpush2.msra.mxu0 0.0
    %384 = vmatprep.subr.mxu0 0.0
    %385 = vmatpush2.msra.mxu0 0.0
    %386 = vmatprep.subr.mxu0 0.0
    %387 = vmatpush2.msra.mxu0 0.0
    %388 = vmatprep.subr.mxu0 0.0
    %389 = vmatpush2.msra.mxu0 0.0
    %390 = vmatprep.subr.mxu0 0.0
    %391 = vmatpush2.msra.mxu0 0.0
    %392 = vmatprep.subr.mxu0 0.0
    %393 = vmatpush2.msra.mxu0 0.0
    %394 = vmatprep.subr.mxu0 0.0
    %395 = vmatpush2.msra.mxu0 0.0
    %396 = vmatprep.subr.mxu0 0.0
    %397 = vmatpush2.msra.mxu0 0.0
    %398 = vmatprep.subr.mxu0 0.0
    %399 = vmatpush2.msra.mxu0 0.0
    %400 = vmatprep.subr.mxu0 0.0
    %401 = vmatpush2.msra.mxu0 0.0
    %402 = vmatprep.subr.mxu0 0.0
    %403 = vmatpush2.msra.mxu0 0.0
    %404 = vmatprep.subr.mxu0 0.0
    %405 = vmatpush2.msra.mxu0 0.0
    %406 = vmatprep.subr.mxu0 0.0
    %407 = vmatpush2.msra.mxu0 0.0
    %408 = vmatprep.subr.mxu0 0.0
    %409 = vmatpush2.msra.mxu0 0.0
    %410 = vmatprep.subr.mxu0 0.0
    %411 = vmatpush2.msra.mxu0 0.0
    %412 = vmatprep.mubr.f32.mxu0 0.0
    %413 = vmatmul.mubr.f32.gmra.mxu0 %v346
    %v414 = vpop.f32.mrf.mxu0
    %v415 = vadd.f32 0.0, %v414
    %v416 = vpop.f32.mrf.mxu0
    %417 = vdwg.mxu0
    %v418 = vadd.f32 %v341, %v415
    %v419 = vmul.f32 %v418, %v232
    %v420 = vtanh.pop %v419
    %v421 = vmul.f32 %v420, %v232
    %v422 = vadd.f32 %v421, %v233
    %v423 = vmul.f32 %v422, %v328
    %425 = vrot.lane.b32.xlu0 %v422, 64
    %v426 = vpop.permute.xlu0 %425
    %v428 = vmul.f32 %v422, %v426
    %430 = vrot.lane.b32.xlu0 %v428, 32
    %v431 = vpop.permute.xlu0 %430
    %v433 = vadd.f32 %v423, %v431
    %v434 = vtanh.pop %v433
    %436 = vrot.lane.b32.xlu0 %v434, 64
    %v437 = vpop.permute.xlu0 %436
    %v439 = vmul.f32 %v422, %v437
    %441 = vrot.lane.b32.xlu0 %v439, 32
    %v442 = vpop.permute.xlu0 %441
    %s444 = scalar_lea.vmem [#allocation3], 8
    %445 = vst.msk [vmem:[%s444] sm:$0xff] %vm239, %v442
    %s446 = scalar_lea.vmem [#allocation2], 16
    %v447 = vld [vmem:[%s446] sm:$0xff]
    %v448 = vld [vmem:[%s3] sm:$0xff]
    %v449 = vld [vmem:[%s3 + $0x8] sm:$0xff]
    %v450 = vld [vmem:[%s3 + $0x10] sm:$0xff]
    %v451 = vld [vmem:[%s3 + $0x18] sm:$0xff]
    %v452 = vsel %vm239, %v442, 0
    %454 = vmatprep.subr.mxu0 0.0
    %455 = vmatpush1.msra.mxu0 0.0
    %456 = vmatprep.subr.mxu0 0.0
    %457 = vmatpush1.msra.mxu0 0.0
    %458 = vmatprep.subr.mxu0 0.0
    %459 = vmatpush1.msra.mxu0 0.0
    %460 = vmatprep.subr.mxu0 0.0
    %461 = vmatpush1.msra.mxu0 0.0
    %462 = vmatprep.subr.mxu0 0.0
    %463 = vmatpush1.msra.mxu0 0.0
    %464 = vmatprep.subr.mxu0 0.0
    %465 = vmatpush1.msra.mxu0 0.0
    %466 = vmatprep.subr.mxu0 0.0
    %467 = vmatpush1.msra.mxu0 0.0
    %468 = vmatprep.subr.mxu0 0.0
    %469 = vmatpush1.msra.mxu0 0.0
    %470 = vmatprep.subr.mxu0 0.0
    %471 = vmatpush1.msra.mxu0 0.0
    %472 = vmatprep.subr.mxu0 0.0
    %473 = vmatpush1.msra.mxu0 0.0
    %474 = vmatprep.subr.mxu0 0.0
    %475 = vmatpush1.msra.mxu0 0.0
    %476 = vmatprep.subr.mxu0 0.0
    %477 = vmatpush1.msra.mxu0 0.0
    %478 = vmatprep.subr.mxu0 0.0
    %479 = vmatpush1.msra.mxu0 %v451
    %480 = vmatprep.subr.mxu0 0.0
    %481 = vmatpush1.msra.mxu0 %v450
    %482 = vmatprep.subr.mxu0 0.0
    %483 = vmatpush1.msra.mxu0 %v449
    %484 = vmatprep.subr.mxu0 0.0
    %485 = vmatpush1.msra.mxu0 %v448
    %486 = vmatprep.subr.mxu0 0.0
    %487 = vmatpush2.msra.mxu0 0.0
    %488 = vmatprep.subr.mxu0 0.0
    %489 = vmatpush2.msra.mxu0 0.0
    %490 = vmatprep.subr.mxu0 0.0
    %491 = vmatpush2.msra.mxu0 0.0
    %492 = vmatprep.subr.mxu0 0.0
    %493 = vmatpush2.msra.mxu0 0.0
    %494 = vmatprep.subr.mxu0 0.0
    %495 = vmatpush2.msra.mxu0 0.0
    %496 = vmatprep.subr.mxu0 0.0
    %497 = vmatpush2.msra.mxu0 0.0
    %498 = vmatprep.subr.mxu0 0.0
    %499 = vmatpush2.msra.mxu0 0.0
    %500 = vmatprep.subr.mxu0 0.0
    %501 = vmatpush2.msra.mxu0 0.0
    %502 = vmatprep.subr.mxu0 0.0
    %503 = vmatpush2.msra.mxu0 0.0
    %504 = vmatprep.subr.mxu0 0.0
    %505 = vmatpush2.msra.mxu0 0.0
    %506 = vmatprep.subr.mxu0 0.0
    %507 = vmatpush2.msra.mxu0 0.0
    %508 = vmatprep.subr.mxu0 0.0
    %509 = vmatpush2.msra.mxu0 0.0
    %510 = vmatprep.subr.mxu0 0.0
    %511 = vmatpush2.msra.mxu0 0.0
    %512 = vmatprep.subr.mxu0 0.0
    %513 = vmatpush2.msra.mxu0 0.0
    %514 = vmatprep.subr.mxu0 0.0
    %515 = vmatpush2.msra.mxu0 0.0
    %516 = vmatprep.subr.mxu0 0.0
    %517 = vmatpush2.msra.mxu0 0.0
    %518 = vmatprep.mubr.f32.mxu0 0.0
    %519 = vmatmul.mubr.f32.gmra.mxu0 %v452
    %v520 = vpop.f32.mrf.mxu0
    %v521 = vadd.f32 0.0, %v520
    %v522 = vpop.f32.mrf.mxu0
    %523 = vdwg.mxu0
    %v524 = vadd.f32 %v447, %v521
    %v525 = vmul.f32 %v524, %v232
    %v526 = vtanh.pop %v525
    %v527 = vmul.f32 %v526, %v232
    %v528 = vadd.f32 %v527, %v233
    %v529 = vmul.f32 %v528, %v433
    %531 = vrot.lane.b32.xlu0 %v528, 64
    %v532 = vpop.permute.xlu0 %531
    %v534 = vmul.f32 %v528, %v532
    %536 = vrot.lane.b32.xlu0 %v534, 32
    %v537 = vpop.permute.xlu0 %536
    %v539 = vadd.f32 %v529, %v537
    %v540 = vtanh.pop %v539
    %542 = vrot.lane.b32.xlu0 %v540, 64
    %v543 = vpop.permute.xlu0 %542
    %v545 = vmul.f32 %v528, %v543
    %547 = vrot.lane.b32.xlu0 %v545, 32
    %v548 = vpop.permute.xlu0 %547
    %s550 = scalar_lea.vmem [#allocation3], 16
    %551 = vst.msk [vmem:[%s550] sm:$0xff] %vm239, %v548
    %s552 = scalar_lea.vmem [#allocation2], 24
    %v553 = vld [vmem:[%s552] sm:$0xff]
    %v554 = vld [vmem:[%s3] sm:$0xff]
    %v555 = vld [vmem:[%s3 + $0x8] sm:$0xff]
    %v556 = vld [vmem:[%s3 + $0x10] sm:$0xff]
    %v557 = vld [vmem:[%s3 + $0x18] sm:$0xff]
    %v558 = vsel %vm239, %v548, 0
    %560 = vmatprep.subr.mxu0 0.0
    %561 = vmatpush1.msra.mxu0 0.0
    %562 = vmatprep.subr.mxu0 0.0
    %563 = vmatpush1.msra.mxu0 0.0
    %564 = vmatprep.subr.mxu0 0.0
    %565 = vmatpush1.msra.mxu0 0.0
    %566 = vmatprep.subr.mxu0 0.0
    %567 = vmatpush1.msra.mxu0 0.0
    %568 = vmatprep.subr.mxu0 0.0
    %569 = vmatpush1.msra.mxu0 0.0
    %570 = vmatprep.subr.mxu0 0.0
    %571 = vmatpush1.msra.mxu0 0.0
    %572 = vmatprep.subr.mxu0 0.0
    %573 = vmatpush1.msra.mxu0 0.0
    %574 = vmatprep.subr.mxu0 0.0
    %575 = vmatpush1.msra.mxu0 0.0
    %576 = vmatprep.subr.mxu0 0.0
    %577 = vmatpush1.msra.mxu0 0.0
    %578 = vmatprep.subr.mxu0 0.0
    %579 = vmatpush1.msra.mxu0 0.0
    %580 = vmatprep.subr.mxu0 0.0
    %581 = vmatpush1.msra.mxu0 0.0
    %582 = vmatprep.subr.mxu0 0.0
    %583 = vmatpush1.msra.mxu0 0.0
    %584 = vmatprep.subr.mxu0 0.0
    %585 = vmatpush1.msra.mxu0 %v557
    %586 = vmatprep.subr.mxu0 0.0
    %587 = vmatpush1.msra.mxu0 %v556
    %588 = vmatprep.subr.mxu0 0.0
    %589 = vmatpush1.msra.mxu0 %v555
    %590 = vmatprep.subr.mxu0 0.0
    %591 = vmatpush1.msra.mxu0 %v554
    %592 = vmatprep.subr.mxu0 0.0
    %593 = vmatpush2.msra.mxu0 0.0
    %594 = vmatprep.subr.mxu0 0.0
    %595 = vmatpush2.msra.mxu0 0.0
    %596 = vmatprep.subr.mxu0 0.0
    %597 = vmatpush2.msra.mxu0 0.0
    %598 = vmatprep.subr.mxu0 0.0
    %599 = vmatpush2.msra.mxu0 0.0
    %600 = vmatprep.subr.mxu0 0.0
    %601 = vmatpush2.msra.mxu0 0.0
    %602 = vmatprep.subr.mxu0 0.0
    %603 = vmatpush2.msra.mxu0 0.0
    %604 = vmatprep.subr.mxu0 0.0
    %605 = vmatpush2.msra.mxu0 0.0
    %606 = vmatprep.subr.mxu0 0.0
    %607 = vmatpush2.msra.mxu0 0.0
    %608 = vmatprep.subr.mxu0 0.0
    %609 = vmatpush2.msra.mxu0 0.0
    %610 = vmatprep.subr.mxu0 0.0
    %611 = vmatpush2.msra.mxu0 0.0
    %612 = vmatprep.subr.mxu0 0.0
    %613 = vmatpush2.msra.mxu0 0.0
    %614 = vmatprep.subr.mxu0 0.0
    %615 = vmatpush2.msra.mxu0 0.0
    %616 = vmatprep.subr.mxu0 0.0
    %617 = vmatpush2.msra.mxu0 0.0
    %618 = vmatprep.subr.mxu0 0.0
    %619 = vmatpush2.msra.mxu0 0.0
    %620 = vmatprep.subr.mxu0 0.0
    %621 = vmatpush2.msra.mxu0 0.0
    %622 = vmatprep.subr.mxu0 0.0
    %623 = vmatpush2.msra.mxu0 0.0
    %624 = vmatprep.mubr.f32.mxu0 0.0
    %625 = vmatmul.mubr.f32.gmra.mxu0 %v558
    %v626 = vpop.f32.mrf.mxu0
    %v627 = vadd.f32 0.0, %v626
    %v628 = vpop.f32.mrf.mxu0
    %629 = vdwg.mxu0
    %v630 = vadd.f32 %v553, %v627
    %v631 = vmul.f32 %v630, %v232
    %v632 = vtanh.pop %v631
    %v633 = vmul.f32 %v632, %v232
    %v634 = vadd.f32 %v633, %v233
    %v635 = vmul.f32 %v634, %v539
    %637 = vrot.lane.b32.xlu0 %v634, 64
    %v638 = vpop.permute.xlu0 %637
    %v640 = vmul.f32 %v634, %v638
    %642 = vrot.lane.b32.xlu0 %v640, 32
    %v643 = vpop.permute.xlu0 %642
    %v645 = vadd.f32 %v635, %v643
    %v646 = vtanh.pop %v645
    %648 = vrot.lane.b32.xlu0 %v646, 64
    %v649 = vpop.permute.xlu0 %648
    %v651 = vmul.f32 %v634, %v649
    %653 = vrot.lane.b32.xlu0 %v651, 32
    %v654 = vpop.permute.xlu0 %653
    %s656 = scalar_lea.vmem [#allocation3], 24
    %657 = vst.msk [vmem:[%s656] sm:$0xff] %vm239, %v654
    %s658 = scalar_lea.vmem [#allocation2], 32
    %v659 = vld [vmem:[%s658] sm:$0xff]
    %v660 = vld [vmem:[%s3] sm:$0xff]
    %v661 = vld [vmem:[%s3 + $0x8] sm:$0xff]
    %v662 = vld [vmem:[%s3 + $0x10] sm:$0xff]
    %v663 = vld [vmem:[%s3 + $0x18] sm:$0xff]
    %v664 = vsel %vm239, %v654, 0
    %666 = vmatprep.subr.mxu0 0.0
    %667 = vmatpush1.msra.mxu0 0.0
    %668 = vmatprep.subr.mxu0 0.0
    %669 = vmatpush1.msra.mxu0 0.0
    %670 = vmatprep.subr.mxu0 0.0
    %671 = vmatpush1.msra.mxu0 0.0
    %672 = vmatprep.subr.mxu0 0.0
    %673 = vmatpush1.msra.mxu0 0.0
    %674 = vmatprep.subr.mxu0 0.0
    %675 = vmatpush1.msra.mxu0 0.0
    %676 = vmatprep.subr.mxu0 0.0
    %677 = vmatpush1.msra.mxu0 0.0
    %678 = vmatprep.subr.mxu0 0.0
    %679 = vmatpush1.msra.mxu0 0.0
    %680 = vmatprep.subr.mxu0 0.0
    %681 = vmatpush1.msra.mxu0 0.0
    %682 = vmatprep.subr.mxu0 0.0
    %683 = vmatpush1.msra.mxu0 0.0
    %684 = vmatprep.subr.mxu0 0.0
    %685 = vmatpush1.msra.mxu0 0.0
    %686 = vmatprep.subr.mxu0 0.0
    %687 = vmatpush1.msra.mxu0 0.0
    %688 = vmatprep.subr.mxu0 0.0
    %689 = vmatpush1.msra.mxu0 0.0
    %690 = vmatprep.subr.mxu0 0.0
    %691 = vmatpush1.msra.mxu0 %v663
    %692 = vmatprep.subr.mxu0 0.0
    %693 = vmatpush1.msra.mxu0 %v662
    %694 = vmatprep.subr.mxu0 0.0
    %695 = vmatpush1.msra.mxu0 %v661
    %696 = vmatprep.subr.mxu0 0.0
    %697 = vmatpush1.msra.mxu0 %v660
    %698 = vmatprep.subr.mxu0 0.0
    %699 = vmatpush2.msra.mxu0 0.0
    %700 = vmatprep.subr.mxu0 0.0
    %701 = vmatpush2.msra.mxu0 0.0
    %702 = vmatprep.subr.mxu0 0.0
    %703 = vmatpush2.msra.mxu0 0.0
    %704 = vmatprep.subr.mxu0 0.0
    %705 = vmatpush2.msra.mxu0 0.0
    %706 = vmatprep.subr.mxu0 0.0
    %707 = vmatpush2.msra.mxu0 0.0
    %708 = vmatprep.subr.mxu0 0.0
    %709 = vmatpush2.msra.mxu0 0.0
    %710 = vmatprep.subr.mxu0 0.0
    %711 = vmatpush2.msra.mxu0 0.0
    %712 = vmatprep.subr.mxu0 0.0
    %713 = vmatpush2.msra.mxu0 0.0
    %714 = vmatprep.subr.mxu0 0.0
    %715 = vmatpush2.msra.mxu0 0.0
    %716 = vmatprep.subr.mxu0 0.0
    %717 = vmatpush2.msra.mxu0 0.0
    %718 = vmatprep.subr.mxu0 0.0
    %719 = vmatpush2.msra.mxu0 0.0
    %720 = vmatprep.subr.mxu0 0.0
    %721 = vmatpush2.msra.mxu0 0.0
    %722 = vmatprep.subr.mxu0 0.0
    %723 = vmatpush2.msra.mxu0 0.0
    %724 = vmatprep.subr.mxu0 0.0
    %725 = vmatpush2.msra.mxu0 0.0
    %726 = vmatprep.subr.mxu0 0.0
    %727 = vmatpush2.msra.mxu0 0.0
    %728 = vmatprep.subr.mxu0 0.0
    %729 = vmatpush2.msra.mxu0 0.0
    %730 = vmatprep.mubr.f32.mxu0 0.0
    %731 = vmatmul.mubr.f32.gmra.mxu0 %v664
    %v732 = vpop.f32.mrf.mxu0
    %v733 = vadd.f32 0.0, %v732
    %v734 = vpop.f32.mrf.mxu0
    %735 = vdwg.mxu0
    %v736 = vadd.f32 %v659, %v733
    %v737 = vmul.f32 %v736, %v232
    %v738 = vtanh.pop %v737
    %v739 = vmul.f32 %v738, %v232
    %v740 = vadd.f32 %v739, %v233
    %v741 = vmul.f32 %v740, %v645
    %743 = vrot.lane.b32.xlu0 %v740, 64
    %v744 = vpop.permute.xlu0 %743
    %v746 = vmul.f32 %v740, %v744
    %748 = vrot.lane.b32.xlu0 %v746, 32
    %v749 = vpop.permute.xlu0 %748
    %v751 = vadd.f32 %v741, %v749
    %v752 = vtanh.pop %v751
    %754 = vrot.lane.b32.xlu0 %v752, 64
    %v755 = vpop.permute.xlu0 %754
    %v757 = vmul.f32 %v740, %v755
    %759 = vrot.lane.b32.xlu0 %v757, 32
    %v760 = vpop.permute.xlu0 %759
    %s762 = scalar_lea.vmem [#allocation3], 32
    %763 = vst.msk [vmem:[%s762] sm:$0xff] %vm239, %v760
    %s764 = scalar_lea.vmem [#allocation2], 40
    %v765 = vld [vmem:[%s764] sm:$0xff]
    %v766 = vld [vmem:[%s3] sm:$0xff]
    %v767 = vld [vmem:[%s3 + $0x8] sm:$0xff]
    %v768 = vld [vmem:[%s3 + $0x10] sm:$0xff]
    %v769 = vld [vmem:[%s3 + $0x18] sm:$0xff]
    %v770 = vsel %vm239, %v760, 0
    %772 = vmatprep.subr.mxu0 0.0
    %773 = vmatpush1.msra.mxu0 0.0
    %774 = vmatprep.subr.mxu0 0.0
    %775 = vmatpush1.msra.mxu0 0.0
    %776 = vmatprep.subr.mxu0 0.0
    %777 = vmatpush1.msra.mxu0 0.0
    %778 = vmatprep.subr.mxu0 0.0
    %779 = vmatpush1.msra.mxu0 0.0
    %780 = vmatprep.subr.mxu0 0.0
    %781 = vmatpush1.msra.mxu0 0.0
    %782 = vmatprep.subr.mxu0 0.0
    %783 = vmatpush1.msra.mxu0 0.0
    %784 = vmatprep.subr.mxu0 0.0
    %785 = vmatpush1.msra.mxu0 0.0
    %786 = vmatprep.subr.mxu0 0.0
    %787 = vmatpush1.msra.mxu0 0.0
    %788 = vmatprep.subr.mxu0 0.0
    %789 = vmatpush1.msra.mxu0 0.0
    %790 = vmatprep.subr.mxu0 0.0
    %791 = vmatpush1.msra.mxu0 0.0
    %792 = vmatprep.subr.mxu0 0.0
    %793 = vmatpush1.msra.mxu0 0.0
    %794 = vmatprep.subr.mxu0 0.0
    %795 = vmatpush1.msra.mxu0 0.0
    %796 = vmatprep.subr.mxu0 0.0
    %797 = vmatpush1.msra.mxu0 %v769
    %798 = vmatprep.subr.mxu0 0.0
    %799 = vmatpush1.msra.mxu0 %v768
    %800 = vmatprep.subr.mxu0 0.0
    %801 = vmatpush1.msra.mxu0 %v767
    %802 = vmatprep.subr.mxu0 0.0
    %803 = vmatpush1.msra.mxu0 %v766
    %804 = vmatprep.subr.mxu0 0.0
    %805 = vmatpush2.msra.mxu0 0.0
    %806 = vmatprep.subr.mxu0 0.0
    %807 = vmatpush2.msra.mxu0 0.0
    %808 = vmatprep.subr.mxu0 0.0
    %809 = vmatpush2.msra.mxu0 0.0
    %810 = vmatprep.subr.mxu0 0.0
    %811 = vmatpush2.msra.mxu0 0.0
    %812 = vmatprep.subr.mxu0 0.0
    %813 = vmatpush2.msra.mxu0 0.0
    %814 = vmatprep.subr.mxu0 0.0
    %815 = vmatpush2.msra.mxu0 0.0
    %816 = vmatprep.subr.mxu0 0.0
    %817 = vmatpush2.msra.mxu0 0.0
    %818 = vmatprep.subr.mxu0 0.0
    %819 = vmatpush2.msra.mxu0 0.0
    %820 = vmatprep.subr.mxu0 0.0
    %821 = vmatpush2.msra.mxu0 0.0
    %822 = vmatprep.subr.mxu0 0.0
    %823 = vmatpush2.msra.mxu0 0.0
    %824 = vmatprep.subr.mxu0 0.0
    %825 = vmatpush2.msra.mxu0 0.0
    %826 = vmatprep.subr.mxu0 0.0
    %827 = vmatpush2.msra.mxu0 0.0
    %828 = vmatprep.subr.mxu0 0.0
    %829 = vmatpush2.msra.mxu0 0.0
    %830 = vmatprep.subr.mxu0 0.0
    %831 = vmatpush2.msra.mxu0 0.0
    %832 = vmatprep.subr.mxu0 0.0
    %833 = vmatpush2.msra.mxu0 0.0
    %834 = vmatprep.subr.mxu0 0.0
    %835 = vmatpush2.msra.mxu0 0.0
    %836 = vmatprep.mubr.f32.mxu0 0.0
    %837 = vmatmul.mubr.f32.gmra.mxu0 %v770
    %v838 = vpop.f32.mrf.mxu0
    %v839 = vadd.f32 0.0, %v838
    %v840 = vpop.f32.mrf.mxu0
    %841 = vdwg.mxu0
    %v842 = vadd.f32 %v765, %v839
    %v843 = vmul.f32 %v842, %v232
    %v844 = vtanh.pop %v843
    %v845 = vmul.f32 %v844, %v232
    %v846 = vadd.f32 %v845, %v233
    %v847 = vmul.f32 %v846, %v751
    %849 = vrot.lane.b32.xlu0 %v846, 64
    %v850 = vpop.permute.xlu0 %849
    %v852 = vmul.f32 %v846, %v850
    %854 = vrot.lane.b32.xlu0 %v852, 32
    %v855 = vpop.permute.xlu0 %854
    %v857 = vadd.f32 %v847, %v855
    %v858 = vtanh.pop %v857
    %860 = vrot.lane.b32.xlu0 %v858, 64
    %v861 = vpop.permute.xlu0 %860
    %v863 = vmul.f32 %v846, %v861
    %865 = vrot.lane.b32.xlu0 %v863, 32
    %v866 = vpop.permute.xlu0 %865
    %s868 = scalar_lea.vmem [#allocation3], 40
    %869 = vst.msk [vmem:[%s868] sm:$0xff] %vm239, %v866
    %s870 = scalar_lea.vmem [#allocation2], 48
    %v871 = vld [vmem:[%s870] sm:$0xff]
    %v872 = vld [vmem:[%s3] sm:$0xff]
    %v873 = vld [vmem:[%s3 + $0x8] sm:$0xff]
    %v874 = vld [vmem:[%s3 + $0x10] sm:$0xff]
    %v875 = vld [vmem:[%s3 + $0x18] sm:$0xff]
    %v876 = vsel %vm239, %v866, 0
    %878 = vmatprep.subr.mxu0 0.0
    %879 = vmatpush1.msra.mxu0 0.0
    %880 = vmatprep.subr.mxu0 0.0
    %881 = vmatpush1.msra.mxu0 0.0
    %882 = vmatprep.subr.mxu0 0.0
    %883 = vmatpush1.msra.mxu0 0.0
    %884 = vmatprep.subr.mxu0 0.0
    %885 = vmatpush1.msra.mxu0 0.0
    %886 = vmatprep.subr.mxu0 0.0
    %887 = vmatpush1.msra.mxu0 0.0
    %888 = vmatprep.subr.mxu0 0.0
    %889 = vmatpush1.msra.mxu0 0.0
    %890 = vmatprep.subr.mxu0 0.0
    %891 = vmatpush1.msra.mxu0 0.0
    %892 = vmatprep.subr.mxu0 0.0
    %893 = vmatpush1.msra.mxu0 0.0
    %894 = vmatprep.subr.mxu0 0.0
    %895 = vmatpush1.msra.mxu0 0.0
    %896 = vmatprep.subr.mxu0 0.0
    %897 = vmatpush1.msra.mxu0 0.0
    %898 = vmatprep.subr.mxu0 0.0
    %899 = vmatpush1.msra.mxu0 0.0
    %900 = vmatprep.subr.mxu0 0.0
    %901 = vmatpush1.msra.mxu0 0.0
    %902 = vmatprep.subr.mxu0 0.0
    %903 = vmatpush1.msra.mxu0 %v875
    %904 = vmatprep.subr.mxu0 0.0
    %905 = vmatpush1.msra.mxu0 %v874
    %906 = vmatprep.subr.mxu0 0.0
    %907 = vmatpush1.msra.mxu0 %v873
    %908 = vmatprep.subr.mxu0 0.0
    %909 = vmatpush1.msra.mxu0 %v872
    %910 = vmatprep.subr.mxu0 0.0
    %911 = vmatpush2.msra.mxu0 0.0
    %912 = vmatprep.subr.mxu0 0.0
    %913 = vmatpush2.msra.mxu0 0.0
    %914 = vmatprep.subr.mxu0 0.0
    %915 = vmatpush2.msra.mxu0 0.0
    %916 = vmatprep.subr.mxu0 0.0
    %917 = vmatpush2.msra.mxu0 0.0
    %918 = vmatprep.subr.mxu0 0.0
    %919 = vmatpush2.msra.mxu0 0.0
    %920 = vmatprep.subr.mxu0 0.0
    %921 = vmatpush2.msra.mxu0 0.0
    %922 = vmatprep.subr.mxu0 0.0
    %923 = vmatpush2.msra.mxu0 0.0
    %924 = vmatprep.subr.mxu0 0.0
    %925 = vmatpush2.msra.mxu0 0.0
    %926 = vmatprep.subr.mxu0 0.0
    %927 = vmatpush2.msra.mxu0 0.0
    %928 = vmatprep.subr.mxu0 0.0
    %929 = vmatpush2.msra.mxu0 0.0
    %930 = vmatprep.subr.mxu0 0.0
    %931 = vmatpush2.msra.mxu0 0.0
    %932 = vmatprep.subr.mxu0 0.0
    %933 = vmatpush2.msra.mxu0 0.0
    %934 = vmatprep.subr.mxu0 0.0
    %935 = vmatpush2.msra.mxu0 0.0
    %936 = vmatprep.subr.mxu0 0.0
    %937 = vmatpush2.msra.mxu0 0.0
    %938 = vmatprep.subr.mxu0 0.0
    %939 = vmatpush2.msra.mxu0 0.0
    %940 = vmatprep.subr.mxu0 0.0
    %941 = vmatpush2.msra.mxu0 0.0
    %942 = vmatprep.mubr.f32.mxu0 0.0
    %943 = vmatmul.mubr.f32.gmra.mxu0 %v876
    %v944 = vpop.f32.mrf.mxu0
    %v945 = vadd.f32 0.0, %v944
    %v946 = vpop.f32.mrf.mxu0
    %947 = vdwg.mxu0
    %v948 = vadd.f32 %v871, %v945
    %v949 = vmul.f32 %v948, %v232
    %v950 = vtanh.pop %v949
    %v951 = vmul.f32 %v950, %v232
    %v952 = vadd.f32 %v951, %v233
    %v953 = vmul.f32 %v952, %v857
    %955 = vrot.lane.b32.xlu0 %v952, 64
    %v956 = vpop.permute.xlu0 %955
    %v958 = vmul.f32 %v952, %v956
    %960 = vrot.lane.b32.xlu0 %v958, 32
    %v961 = vpop.permute.xlu0 %960
    %v963 = vadd.f32 %v953, %v961
    %v964 = vtanh.pop %v963
    %966 = vrot.lane.b32.xlu0 %v964, 64
    %v967 = vpop.permute.xlu0 %966
    %v969 = vmul.f32 %v952, %v967
    %971 = vrot.lane.b32.xlu0 %v969, 32
    %v972 = vpop.permute.xlu0 %971
    %s974 = scalar_lea.vmem [#allocation3], 48
    %975 = vst.msk [vmem:[%s974] sm:$0xff] %vm239, %v972
    %s976 = scalar_lea.vmem [#allocation2], 56
    %v977 = vld [vmem:[%s976] sm:$0xff]
    %v978 = vld [vmem:[%s3] sm:$0xff]
    %v979 = vld [vmem:[%s3 + $0x8] sm:$0xff]
    %v980 = vld [vmem:[%s3 + $0x10] sm:$0xff]
    %v981 = vld [vmem:[%s3 + $0x18] sm:$0xff]
    %v982 = vsel %vm239, %v972, 0
    %984 = vmatprep.subr.mxu0 0.0
    %985 = vmatpush1.msra.mxu0 0.0
    %986 = vmatprep.subr.mxu0 0.0
    %987 = vmatpush1.msra.mxu0 0.0
    %988 = vmatprep.subr.mxu0 0.0
    %989 = vmatpush1.msra.mxu0 0.0
    %990 = vmatprep.subr.mxu0 0.0
    %991 = vmatpush1.msra.mxu0 0.0
    %992 = vmatprep.subr.mxu0 0.0
    %993 = vmatpush1.msra.mxu0 0.0
    %994 = vmatprep.subr.mxu0 0.0
    %995 = vmatpush1.msra.mxu0 0.0
    %996 = vmatprep.subr.mxu0 0.0
    %997 = vmatpush1.msra.mxu0 0.0
    %998 = vmatprep.subr.mxu0 0.0
    %999 = vmatpush1.msra.mxu0 0.0
    %1000 = vmatprep.subr.mxu0 0.0
    %1001 = vmatpush1.msra.mxu0 0.0
    %1002 = vmatprep.subr.mxu0 0.0
    %1003 = vmatpush1.msra.mxu0 0.0
    %1004 = vmatprep.subr.mxu0 0.0
    %1005 = vmatpush1.msra.mxu0 0.0
    %1006 = vmatprep.subr.mxu0 0.0
    %1007 = vmatpush1.msra.mxu0 0.0
    %1008 = vmatprep.subr.mxu0 0.0
    %1009 = vmatpush1.msra.mxu0 %v981
    %1010 = vmatprep.subr.mxu0 0.0
    %1011 = vmatpush1.msra.mxu0 %v980
    %1012 = vmatprep.subr.mxu0 0.0
    %1013 = vmatpush1.msra.mxu0 %v979
    %1014 = vmatprep.subr.mxu0 0.0
    %1015 = vmatpush1.msra.mxu0 %v978
    %1016 = vmatprep.subr.mxu0 0.0
    %1017 = vmatpush2.msra.mxu0 0.0
    %1018 = vmatprep.subr.mxu0 0.0
    %1019 = vmatpush2.msra.mxu0 0.0
    %1020 = vmatprep.subr.mxu0 0.0
    %1021 = vmatpush2.msra.mxu0 0.0
    %1022 = vmatprep.subr.mxu0 0.0
    %1023 = vmatpush2.msra.mxu0 0.0
    %1024 = vmatprep.subr.mxu0 0.0
    %1025 = vmatpush2.msra.mxu0 0.0
    %1026 = vmatprep.subr.mxu0 0.0
    %1027 = vmatpush2.msra.mxu0 0.0
    %1028 = vmatprep.subr.mxu0 0.0
    %1029 = vmatpush2.msra.mxu0 0.0
    %1030 = vmatprep.subr.mxu0 0.0
    %1031 = vmatpush2.msra.mxu0 0.0
    %1032 = vmatprep.subr.mxu0 0.0
    %1033 = vmatpush2.msra.mxu0 0.0
    %1034 = vmatprep.subr.mxu0 0.0
    %1035 = vmatpush2.msra.mxu0 0.0
    %1036 = vmatprep.subr.mxu0 0.0
    %1037 = vmatpush2.msra.mxu0 0.0
    %1038 = vmatprep.subr.mxu0 0.0
    %1039 = vmatpush2.msra.mxu0 0.0
    %1040 = vmatprep.subr.mxu0 0.0
    %1041 = vmatpush2.msra.mxu0 0.0
    %1042 = vmatprep.subr.mxu0 0.0
    %1043 = vmatpush2.msra.mxu0 0.0
    %1044 = vmatprep.subr.mxu0 0.0
    %1045 = vmatpush2.msra.mxu0 0.0
    %1046 = vmatprep.subr.mxu0 0.0
    %1047 = vmatpush2.msra.mxu0 0.0
    %1048 = vmatprep.mubr.f32.mxu0 0.0
    %1049 = vmatmul.mubr.f32.gmra.mxu0 %v982
    %v1050 = vpop.f32.mrf.mxu0
    %v1051 = vadd.f32 0.0, %v1050
    %v1052 = vpop.f32.mrf.mxu0
    %1053 = vdwg.mxu0
    %v1054 = vadd.f32 %v977, %v1051
    %v1055 = vmul.f32 %v1054, %v232
    %v1056 = vtanh.pop %v1055
    %v1057 = vmul.f32 %v1056, %v232
    %v1058 = vadd.f32 %v1057, %v233
    %v1059 = vmul.f32 %v1058, %v963
    %1061 = vrot.lane.b32.xlu0 %v1058, 64
    %v1062 = vpop.permute.xlu0 %1061
    %v1064 = vmul.f32 %v1058, %v1062
    %1066 = vrot.lane.b32.xlu0 %v1064, 32
    %v1067 = vpop.permute.xlu0 %1066
    %v1069 = vadd.f32 %v1059, %v1067
    %v1070 = vtanh.pop %v1069
    %1072 = vrot.lane.b32.xlu0 %v1070, 64
    %v1073 = vpop.permute.xlu0 %1072
    %v1075 = vmul.f32 %v1058, %v1073
    %1077 = vrot.lane.b32.xlu0 %v1075, 32
    %v1078 = vpop.permute.xlu0 %1077
    %s1080 = scalar_lea.vmem [#allocation3], 56
    %1081 = vst.msk [vmem:[%s1080] sm:$0xff] %vm239, %v1078
    %s1082 = scalar_lea.vmem [#allocation2], 64
    %v1083 = vld [vmem:[%s1082] sm:$0xff]
    %v1084 = vld [vmem:[%s3] sm:$0xff]
    %v1085 = vld [vmem:[%s3 + $0x8] sm:$0xff]
    %v1086 = vld [vmem:[%s3 + $0x10] sm:$0xff]
    %v1087 = vld [vmem:[%s3 + $0x18] sm:$0xff]
    %v1088 = vsel %vm239, %v1078, 0
    %1090 = vmatprep.subr.mxu0 0.0
    %1091 = vmatpush1.msra.mxu0 0.0
    %1092 = vmatprep.subr.mxu0 0.0
    %1093 = vmatpush1.msra.mxu0 0.0
    %1094 = vmatprep.subr.mxu0 0.0
    %1095 = vmatpush1.msra.mxu0 0.0
    %1096 = vmatprep.subr.mxu0 0.0
    %1097 = vmatpush1.msra.mxu0 0.0
    %1098 = vmatprep.subr.mxu0 0.0
    %1099 = vmatpush1.msra.mxu0 0.0
    %1100 = vmatprep.subr.mxu0 0.0
    %1101 = vmatpush1.msra.mxu0 0.0
    %1102 = vmatprep.subr.mxu0 0.0
    %1103 = vmatpush1.msra.mxu0 0.0
    %1104 = vmatprep.subr.mxu0 0.0
    %1105 = vmatpush1.msra.mxu0 0.0
    %1106 = vmatprep.subr.mxu0 0.0
    %1107 = vmatpush1.msra.mxu0 0.0
    %1108 = vmatprep.subr.mxu0 0.0
    %1109 = vmatpush1.msra.mxu0 0.0
    %1110 = vmatprep.subr.mxu0 0.0
    %1111 = vmatpush1.msra.mxu0 0.0
    %1112 = vmatprep.subr.mxu0 0.0
    %1113 = vmatpush1.msra.mxu0 0.0
    %1114 = vmatprep.subr.mxu0 0.0
    %1115 = vmatpush1.msra.mxu0 %v1087
    %1116 = vmatprep.subr.mxu0 0.0
    %1117 = vmatpush1.msra.mxu0 %v1086
    %1118 = vmatprep.subr.mxu0 0.0
    %1119 = vmatpush1.msra.mxu0 %v1085
    %1120 = vmatprep.subr.mxu0 0.0
    %1121 = vmatpush1.msra.mxu0 %v1084
    %1122 = vmatprep.subr.mxu0 0.0
    %1123 = vmatpush2.msra.mxu0 0.0
    %1124 = vmatprep.subr.mxu0 0.0
    %1125 = vmatpush2.msra.mxu0 0.0
    %1126 = vmatprep.subr.mxu0 0.0
    %1127 = vmatpush2.msra.mxu0 0.0
    %1128 = vmatprep.subr.mxu0 0.0
    %1129 = vmatpush2.msra.mxu0 0.0
    %1130 = vmatprep.subr.mxu0 0.0
    %1131 = vmatpush2.msra.mxu0 0.0
    %1132 = vmatprep.subr.mxu0 0.0
    %1133 = vmatpush2.msra.mxu0 0.0
    %1134 = vmatprep.subr.mxu0 0.0
    %1135 = vmatpush2.msra.mxu0 0.0
    %1136 = vmatprep.subr.mxu0 0.0
    %1137 = vmatpush2.msra.mxu0 0.0
    %1138 = vmatprep.subr.mxu0 0.0
    %1139 = vmatpush2.msra.mxu0 0.0
    %1140 = vmatprep.subr.mxu0 0.0
    %1141 = vmatpush2.msra.mxu0 0.0
    %1142 = vmatprep.subr.mxu0 0.0
    %1143 = vmatpush2.msra.mxu0 0.0
    %1144 = vmatprep.subr.mxu0 0.0
    %1145 = vmatpush2.msra.mxu0 0.0
    %1146 = vmatprep.subr.mxu0 0.0
    %1147 = vmatpush2.msra.mxu0 0.0
    %1148 = vmatprep.subr.mxu0 0.0
    %1149 = vmatpush2.msra.mxu0 0.0
    %1150 = vmatprep.subr.mxu0 0.0
    %1151 = vmatpush2.msra.mxu0 0.0
    %1152 = vmatprep.subr.mxu0 0.0
    %1153 = vmatpush2.msra.mxu0 0.0
    %1154 = vmatprep.mubr.f32.mxu0 0.0
    %1155 = vmatmul.mubr.f32.gmra.mxu0 %v1088
    %v1156 = vpop.f32.mrf.mxu0
    %v1157 = vadd.f32 0.0, %v1156
    %v1158 = vpop.f32.mrf.mxu0
    %1159 = vdwg.mxu0
    %v1160 = vadd.f32 %v1083, %v1157
    %v1161 = vmul.f32 %v1160, %v232
    %v1162 = vtanh.pop %v1161
    %v1163 = vmul.f32 %v1162, %v232
    %v1164 = vadd.f32 %v1163, %v233
    %v1165 = vmul.f32 %v1164, %v1069
    %1167 = vrot.lane.b32.xlu0 %v1164, 64
    %v1168 = vpop.permute.xlu0 %1167
    %v1170 = vmul.f32 %v1164, %v1168
    %1172 = vrot.lane.b32.xlu0 %v1170, 32
    %v1173 = vpop.permute.xlu0 %1172
    %v1175 = vadd.f32 %v1165, %v1173
    %v1176 = vtanh.pop %v1175
    %1178 = vrot.lane.b32.xlu0 %v1176, 64
    %v1179 = vpop.permute.xlu0 %1178
    %v1181 = vmul.f32 %v1164, %v1179
    %1183 = vrot.lane.b32.xlu0 %v1181, 32
    %v1184 = vpop.permute.xlu0 %1183
    %s1186 = scalar_lea.vmem [#allocation3], 64
    %1187 = vst.msk [vmem:[%s1186] sm:$0xff] %vm239, %v1184
    %s1188 = scalar_lea.vmem [#allocation2], 72
    %v1189 = vld [vmem:[%s1188] sm:$0xff]
    %v1190 = vld [vmem:[%s3] sm:$0xff]
    %v1191 = vld [vmem:[%s3 + $0x8] sm:$0xff]
    %v1192 = vld [vmem:[%s3 + $0x10] sm:$0xff]
    %v1193 = vld [vmem:[%s3 + $0x18] sm:$0xff]
    %v1194 = vsel %vm239, %v1184, 0
    %1196 = vmatprep.subr.mxu0 0.0
    %1197 = vmatpush1.msra.mxu0 0.0
    %1198 = vmatprep.subr.mxu0 0.0
    %1199 = vmatpush1.msra.mxu0 0.0
    %1200 = vmatprep.subr.mxu0 0.0
    %1201 = vmatpush1.msra.mxu0 0.0
    %1202 = vmatprep.subr.mxu0 0.0
    %1203 = vmatpush1.msra.mxu0 0.0
    %1204 = vmatprep.subr.mxu0 0.0
    %1205 = vmatpush1.msra.mxu0 0.0
    %1206 = vmatprep.subr.mxu0 0.0
    %1207 = vmatpush1.msra.mxu0 0.0
    %1208 = vmatprep.subr.mxu0 0.0
    %1209 = vmatpush1.msra.mxu0 0.0
    %1210 = vmatprep.subr.mxu0 0.0
    %1211 = vmatpush1.msra.mxu0 0.0
    %1212 = vmatprep.subr.mxu0 0.0
    %1213 = vmatpush1.msra.mxu0 0.0
    %1214 = vmatprep.subr.mxu0 0.0
    %1215 = vmatpush1.msra.mxu0 0.0
    %1216 = vmatprep.subr.mxu0 0.0
    %1217 = vmatpush1.msra.mxu0 0.0
    %1218 = vmatprep.subr.mxu0 0.0
    %1219 = vmatpush1.msra.mxu0 0.0
    %1220 = vmatprep.subr.mxu0 0.0
    %1221 = vmatpush1.msra.mxu0 %v1193
    %1222 = vmatprep.subr.mxu0 0.0
    %1223 = vmatpush1.msra.mxu0 %v1192
    %1224 = vmatprep.subr.mxu0 0.0
    %1225 = vmatpush1.msra.mxu0 %v1191
    %1226 = vmatprep.subr.mxu0 0.0
    %1227 = vmatpush1.msra.mxu0 %v1190
    %1228 = vmatprep.subr.mxu0 0.0
    %1229 = vmatpush2.msra.mxu0 0.0
    %1230 = vmatprep.subr.mxu0 0.0
    %1231 = vmatpush2.msra.mxu0 0.0
    %1232 = vmatprep.subr.mxu0 0.0
    %1233 = vmatpush2.msra.mxu0 0.0
    %1234 = vmatprep.subr.mxu0 0.0
    %1235 = vmatpush2.msra.mxu0 0.0
    %1236 = vmatprep.subr.mxu0 0.0
    %1237 = vmatpush2.msra.mxu0 0.0
    %1238 = vmatprep.subr.mxu0 0.0
    %1239 = vmatpush2.msra.mxu0 0.0
    %1240 = vmatprep.subr.mxu0 0.0
    %1241 = vmatpush2.msra.mxu0 0.0
    %1242 = vmatprep.subr.mxu0 0.0
    %1243 = vmatpush2.msra.mxu0 0.0
    %1244 = vmatprep.subr.mxu0 0.0
    %1245 = vmatpush2.msra.mxu0 0.0
    %1246 = vmatprep.subr.mxu0 0.0
    %1247 = vmatpush2.msra.mxu0 0.0
    %1248 = vmatprep.subr.mxu0 0.0
    %1249 = vmatpush2.msra.mxu0 0.0
    %1250 = vmatprep.subr.mxu0 0.0
    %1251 = vmatpush2.msra.mxu0 0.0
    %1252 = vmatprep.subr.mxu0 0.0
    %1253 = vmatpush2.msra.mxu0 0.0
    %1254 = vmatprep.subr.mxu0 0.0
    %1255 = vmatpush2.msra.mxu0 0.0
    %1256 = vmatprep.subr.mxu0 0.0
    %1257 = vmatpush2.msra.mxu0 0.0
    %1258 = vmatprep.subr.mxu0 0.0
    %1259 = vmatpush2.msra.mxu0 0.0
    %1260 = vmatprep.mubr.f32.mxu0 0.0
    %1261 = vmatmul.mubr.f32.gmra.mxu0 %v1194
    %v1262 = vpop.f32.mrf.mxu0
    %v1263 = vadd.f32 0.0, %v1262
    %v1264 = vpop.f32.mrf.mxu0
    %1265 = vdwg.mxu0
    %v1266 = vadd.f32 %v1189, %v1263
    %v1267 = vmul.f32 %v1266, %v232
    %v1268 = vtanh.pop %v1267
    %v1269 = vmul.f32 %v1268, %v232
    %v1270 = vadd.f32 %v1269, %v233
    %v1271 = vmul.f32 %v1270, %v1175
    %1273 = vrot.lane.b32.xlu0 %v1270, 64
    %v1274 = vpop.permute.xlu0 %1273
    %v1276 = vmul.f32 %v1270, %v1274
    %1278 = vrot.lane.b32.xlu0 %v1276, 32
    %v1279 = vpop.permute.xlu0 %1278
    %v1281 = vadd.f32 %v1271, %v1279
    %v1282 = vtanh.pop %v1281
    %1284 = vrot.lane.b32.xlu0 %v1282, 64
    %v1285 = vpop.permute.xlu0 %1284
    %v1287 = vmul.f32 %v1270, %v1285
    %1289 = vrot.lane.b32.xlu0 %v1287, 32
    %v1290 = vpop.permute.xlu0 %1289
    %s1292 = scalar_lea.vmem [#allocation3], 72
    %1293 = vst.msk [vmem:[%s1292] sm:$0xff] %vm239, %v1290
    %s1294 = scalar_lea.vmem [#allocation2], 80
    %v1295 = vld [vmem:[%s1294] sm:$0xff]
    %v1296 = vld [vmem:[%s3] sm:$0xff]
    %v1297 = vld [vmem:[%s3 + $0x8] sm:$0xff]
    %v1298 = vld [vmem:[%s3 + $0x10] sm:$0xff]
    %v1299 = vld [vmem:[%s3 + $0x18] sm:$0xff]
    %v1300 = vsel %vm239, %v1290, 0
    %1302 = vmatprep.subr.mxu0 0.0
    %1303 = vmatpush1.msra.mxu0 0.0
    %1304 = vmatprep.subr.mxu0 0.0
    %1305 = vmatpush1.msra.mxu0 0.0
    %1306 = vmatprep.subr.mxu0 0.0
    %1307 = vmatpush1.msra.mxu0 0.0
    %1308 = vmatprep.subr.mxu0 0.0
    %1309 = vmatpush1.msra.mxu0 0.0
    %1310 = vmatprep.subr.mxu0 0.0
    %1311 = vmatpush1.msra.mxu0 0.0
    %1312 = vmatprep.subr.mxu0 0.0
    %1313 = vmatpush1.msra.mxu0 0.0
    %1314 = vmatprep.subr.mxu0 0.0
    %1315 = vmatpush1.msra.mxu0 0.0
    %1316 = vmatprep.subr.mxu0 0.0
    %1317 = vmatpush1.msra.mxu0 0.0
    %1318 = vmatprep.subr.mxu0 0.0
    %1319 = vmatpush1.msra.mxu0 0.0
    %1320 = vmatprep.subr.mxu0 0.0
    %1321 = vmatpush1.msra.mxu0 0.0
    %1322 = vmatprep.subr.mxu0 0.0
    %1323 = vmatpush1.msra.mxu0 0.0
    %1324 = vmatprep.subr.mxu0 0.0
    %1325 = vmatpush1.msra.mxu0 0.0
    %1326 = vmatprep.subr.mxu0 0.0
    %1327 = vmatpush1.msra.mxu0 %v1299
    %1328 = vmatprep.subr.mxu0 0.0
    %1329 = vmatpush1.msra.mxu0 %v1298
    %1330 = vmatprep.subr.mxu0 0.0
    %1331 = vmatpush1.msra.mxu0 %v1297
    %1332 = vmatprep.subr.mxu0 0.0
    %1333 = vmatpush1.msra.mxu0 %v1296
    %1334 = vmatprep.subr.mxu0 0.0
    %1335 = vmatpush2.msra.mxu0 0.0
    %1336 = vmatprep.subr.mxu0 0.0
    %1337 = vmatpush2.msra.mxu0 0.0
    %1338 = vmatprep.subr.mxu0 0.0
    %1339 = vmatpush2.msra.mxu0 0.0
    %1340 = vmatprep.subr.mxu0 0.0
    %1341 = vmatpush2.msra.mxu0 0.0
    %1342 = vmatprep.subr.mxu0 0.0
    %1343 = vmatpush2.msra.mxu0 0.0
    %1344 = vmatprep.subr.mxu0 0.0
    %1345 = vmatpush2.msra.mxu0 0.0
    %1346 = vmatprep.subr.mxu0 0.0
    %1347 = vmatpush2.msra.mxu0 0.0
    %1348 = vmatprep.subr.mxu0 0.0
    %1349 = vmatpush2.msra.mxu0 0.0
    %1350 = vmatprep.subr.mxu0 0.0
    %1351 = vmatpush2.msra.mxu0 0.0
    %1352 = vmatprep.subr.mxu0 0.0
    %1353 = vmatpush2.msra.mxu0 0.0
    %1354 = vmatprep.subr.mxu0 0.0
    %1355 = vmatpush2.msra.mxu0 0.0
    %1356 = vmatprep.subr.mxu0 0.0
    %1357 = vmatpush2.msra.mxu0 0.0
    %1358 = vmatprep.subr.mxu0 0.0
    %1359 = vmatpush2.msra.mxu0 0.0
    %1360 = vmatprep.subr.mxu0 0.0
    %1361 = vmatpush2.msra.mxu0 0.0
    %1362 = vmatprep.subr.mxu0 0.0
    %1363 = vmatpush2.msra.mxu0 0.0
    %1364 = vmatprep.subr.mxu0 0.0
    %1365 = vmatpush2.msra.mxu0 0.0
    %1366 = vmatprep.mubr.f32.mxu0 0.0
    %1367 = vmatmul.mubr.f32.gmra.mxu0 %v1300
    %v1368 = vpop.f32.mrf.mxu0
    %v1369 = vadd.f32 0.0, %v1368
    %v1370 = vpop.f32.mrf.mxu0
    %1371 = vdwg.mxu0
    %v1372 = vadd.f32 %v1295, %v1369
    %v1373 = vmul.f32 %v1372, %v232
    %v1374 = vtanh.pop %v1373
    %v1375 = vmul.f32 %v1374, %v232
    %v1376 = vadd.f32 %v1375, %v233
    %v1377 = vmul.f32 %v1376, %v1281
    %1379 = vrot.lane.b32.xlu0 %v1376, 64
    %v1380 = vpop.permute.xlu0 %1379
    %v1382 = vmul.f32 %v1376, %v1380
    %1384 = vrot.lane.b32.xlu0 %v1382, 32
    %v1385 = vpop.permute.xlu0 %1384
    %v1387 = vadd.f32 %v1377, %v1385
    %v1388 = vtanh.pop %v1387
    %1390 = vrot.lane.b32.xlu0 %v1388, 64
    %v1391 = vpop.permute.xlu0 %1390
    %v1393 = vmul.f32 %v1376, %v1391
    %1395 = vrot.lane.b32.xlu0 %v1393, 32
    %v1396 = vpop.permute.xlu0 %1395
    %s1398 = scalar_lea.vmem [#allocation3], 80
    %1399 = vst.msk [vmem:[%s1398] sm:$0xff] %vm239, %v1396
    %s1400 = scalar_lea.vmem [#allocation2], 88
    %v1401 = vld [vmem:[%s1400] sm:$0xff]
    %v1402 = vld [vmem:[%s3] sm:$0xff]
    %v1403 = vld [vmem:[%s3 + $0x8] sm:$0xff]
    %v1404 = vld [vmem:[%s3 + $0x10] sm:$0xff]
    %v1405 = vld [vmem:[%s3 + $0x18] sm:$0xff]
    %v1406 = vsel %vm239, %v1396, 0
    %1408 = vmatprep.subr.mxu0 0.0
    %1409 = vmatpush1.msra.mxu0 0.0
    %1410 = vmatprep.subr.mxu0 0.0
    %1411 = vmatpush1.msra.mxu0 0.0
    %1412 = vmatprep.subr.mxu0 0.0
    %1413 = vmatpush1.msra.mxu0 0.0
    %1414 = vmatprep.subr.mxu0 0.0
    %1415 = vmatpush1.msra.mxu0 0.0
    %1416 = vmatprep.subr.mxu0 0.0
    %1417 = vmatpush1.msra.mxu0 0.0
    %1418 = vmatprep.subr.mxu0 0.0
    %1419 = vmatpush1.msra.mxu0 0.0
    %1420 = vmatprep.subr.mxu0 0.0
    %1421 = vmatpush1.msra.mxu0 0.0
    %1422 = vmatprep.subr.mxu0 0.0
    %1423 = vmatpush1.msra.mxu0 0.0
    %1424 = vmatprep.subr.mxu0 0.0
    %1425 = vmatpush1.msra.mxu0 0.0
    %1426 = vmatprep.subr.mxu0 0.0
    %1427 = vmatpush1.msra.mxu0 0.0
    %1428 = vmatprep.subr.mxu0 0.0
    %1429 = vmatpush1.msra.mxu0 0.0
    %1430 = vmatprep.subr.mxu0 0.0
    %1431 = vmatpush1.msra.mxu0 0.0
    %1432 = vmatprep.subr.mxu0 0.0
    %1433 = vmatpush1.msra.mxu0 %v1405
    %1434 = vmatprep.subr.mxu0 0.0
    %1435 = vmatpush1.msra.mxu0 %v1404
    %1436 = vmatprep.subr.mxu0 0.0
    %1437 = vmatpush1.msra.mxu0 %v1403
    %1438 = vmatprep.subr.mxu0 0.0
    %1439 = vmatpush1.msra.mxu0 %v1402
    %1440 = vmatprep.subr.mxu0 0.0
    %1441 = vmatpush2.msra.mxu0 0.0
    %1442 = vmatprep.subr.mxu0 0.0
    %1443 = vmatpush2.msra.mxu0 0.0
    %1444 = vmatprep.subr.mxu0 0.0
    %1445 = vmatpush2.msra.mxu0 0.0
    %1446 = vmatprep.subr.mxu0 0.0
    %1447 = vmatpush2.msra.mxu0 0.0
    %1448 = vmatprep.subr.mxu0 0.0
    %1449 = vmatpush2.msra.mxu0 0.0
    %1450 = vmatprep.subr.mxu0 0.0
    %1451 = vmatpush2.msra.mxu0 0.0
    %1452 = vmatprep.subr.mxu0 0.0
    %1453 = vmatpush2.msra.mxu0 0.0
    %1454 = vmatprep.subr.mxu0 0.0
    %1455 = vmatpush2.msra.mxu0 0.0
    %1456 = vmatprep.subr.mxu0 0.0
    %1457 = vmatpush2.msra.mxu0 0.0
    %1458 = vmatprep.subr.mxu0 0.0
    %1459 = vmatpush2.msra.mxu0 0.0
    %1460 = vmatprep.subr.mxu0 0.0
    %1461 = vmatpush2.msra.mxu0 0.0
    %1462 = vmatprep.subr.mxu0 0.0
    %1463 = vmatpush2.msra.mxu0 0.0
    %1464 = vmatprep.subr.mxu0 0.0
    %1465 = vmatpush2.msra.mxu0 0.0
    %1466 = vmatprep.subr.mxu0 0.0
    %1467 = vmatpush2.msra.mxu0 0.0
    %1468 = vmatprep.subr.mxu0 0.0
    %1469 = vmatpush2.msra.mxu0 0.0
    %1470 = vmatprep.subr.mxu0 0.0
    %1471 = vmatpush2.msra.mxu0 0.0
    %1472 = vmatprep.mubr.f32.mxu0 0.0
    %1473 = vmatmul.mubr.f32.gmra.mxu0 %v1406
    %v1474 = vpop.f32.mrf.mxu0
    %v1475 = vadd.f32 0.0, %v1474
    %v1476 = vpop.f32.mrf.mxu0
    %1477 = vdwg.mxu0
    %v1478 = vadd.f32 %v1401, %v1475
    %v1479 = vmul.f32 %v1478, %v232
    %v1480 = vtanh.pop %v1479
    %v1481 = vmul.f32 %v1480, %v232
    %v1482 = vadd.f32 %v1481, %v233
    %v1483 = vmul.f32 %v1482, %v1387
    %1485 = vrot.lane.b32.xlu0 %v1482, 64
    %v1486 = vpop.permute.xlu0 %1485
    %v1488 = vmul.f32 %v1482, %v1486
    %1490 = vrot.lane.b32.xlu0 %v1488, 32
    %v1491 = vpop.permute.xlu0 %1490
    %v1493 = vadd.f32 %v1483, %v1491
    %v1494 = vtanh.pop %v1493
    %1496 = vrot.lane.b32.xlu0 %v1494, 64
    %v1497 = vpop.permute.xlu0 %1496
    %v1499 = vmul.f32 %v1482, %v1497
    %1501 = vrot.lane.b32.xlu0 %v1499, 32
    %v1502 = vpop.permute.xlu0 %1501
    %s1504 = scalar_lea.vmem [#allocation3], 88
    %1505 = vst.msk [vmem:[%s1504] sm:$0xff] %vm239, %v1502
    %s1506 = scalar_lea.vmem [#allocation2], 96
    %v1507 = vld [vmem:[%s1506] sm:$0xff]
    %v1508 = vld [vmem:[%s3] sm:$0xff]
    %v1509 = vld [vmem:[%s3 + $0x8] sm:$0xff]
    %v1510 = vld [vmem:[%s3 + $0x10] sm:$0xff]
    %v1511 = vld [vmem:[%s3 + $0x18] sm:$0xff]
    %v1512 = vsel %vm239, %v1502, 0
    %1514 = vmatprep.subr.mxu0 0.0
    %1515 = vmatpush1.msra.mxu0 0.0
    %1516 = vmatprep.subr.mxu0 0.0
    %1517 = vmatpush1.msra.mxu0 0.0
    %1518 = vmatprep.subr.mxu0 0.0
    %1519 = vmatpush1.msra.mxu0 0.0
    %1520 = vmatprep.subr.mxu0 0.0
    %1521 = vmatpush1.msra.mxu0 0.0
    %1522 = vmatprep.subr.mxu0 0.0
    %1523 = vmatpush1.msra.mxu0 0.0
    %1524 = vmatprep.subr.mxu0 0.0
    %1525 = vmatpush1.msra.mxu0 0.0
    %1526 = vmatprep.subr.mxu0 0.0
    %1527 = vmatpush1.msra.mxu0 0.0
    %1528 = vmatprep.subr.mxu0 0.0
    %1529 = vmatpush1.msra.mxu0 0.0
    %1530 = vmatprep.subr.mxu0 0.0
    %1531 = vmatpush1.msra.mxu0 0.0
    %1532 = vmatprep.subr.mxu0 0.0
    %1533 = vmatpush1.msra.mxu0 0.0
    %1534 = vmatprep.subr.mxu0 0.0
    %1535 = vmatpush1.msra.mxu0 0.0
    %1536 = vmatprep.subr.mxu0 0.0
    %1537 = vmatpush1.msra.mxu0 0.0
    %1538 = vmatprep.subr.mxu0 0.0
    %1539 = vmatpush1.msra.mxu0 %v1511
    %1540 = vmatprep.subr.mxu0 0.0
    %1541 = vmatpush1.msra.mxu0 %v1510
    %1542 = vmatprep.subr.mxu0 0.0
    %1543 = vmatpush1.msra.mxu0 %v1509
    %1544 = vmatprep.subr.mxu0 0.0
    %1545 = vmatpush1.msra.mxu0 %v1508
    %1546 = vmatprep.subr.mxu0 0.0
    %1547 = vmatpush2.msra.mxu0 0.0
    %1548 = vmatprep.subr.mxu0 0.0
    %1549 = vmatpush2.msra.mxu0 0.0
    %1550 = vmatprep.subr.mxu0 0.0
    %1551 = vmatpush2.msra.mxu0 0.0
    %1552 = vmatprep.subr.mxu0 0.0
    %1553 = vmatpush2.msra.mxu0 0.0
    %1554 = vmatprep.subr.mxu0 0.0
    %1555 = vmatpush2.msra.mxu0 0.0
    %1556 = vmatprep.subr.mxu0 0.0
    %1557 = vmatpush2.msra.mxu0 0.0
    %1558 = vmatprep.subr.mxu0 0.0
    %1559 = vmatpush2.msra.mxu0 0.0
    %1560 = vmatprep.subr.mxu0 0.0
    %1561 = vmatpush2.msra.mxu0 0.0
    %1562 = vmatprep.subr.mxu0 0.0
    %1563 = vmatpush2.msra.mxu0 0.0
    %1564 = vmatprep.subr.mxu0 0.0
    %1565 = vmatpush2.msra.mxu0 0.0
    %1566 = vmatprep.subr.mxu0 0.0
    %1567 = vmatpush2.msra.mxu0 0.0
    %1568 = vmatprep.subr.mxu0 0.0
    %1569 = vmatpush2.msra.mxu0 0.0
    %1570 = vmatprep.subr.mxu0 0.0
    %1571 = vmatpush2.msra.mxu0 0.0
    %1572 = vmatprep.subr.mxu0 0.0
    %1573 = vmatpush2.msra.mxu0 0.0
    %1574 = vmatprep.subr.mxu0 0.0
    %1575 = vmatpush2.msra.mxu0 0.0
    %1576 = vmatprep.subr.mxu0 0.0
    %1577 = vmatpush2.msra.mxu0 0.0
    %1578 = vmatprep.mubr.f32.mxu0 0.0
    %1579 = vmatmul.mubr.f32.gmra.mxu0 %v1512
    %v1580 = vpop.f32.mrf.mxu0
    %v1581 = vadd.f32 0.0, %v1580
    %v1582 = vpop.f32.mrf.mxu0
    %1583 = vdwg.mxu0
    %v1584 = vadd.f32 %v1507, %v1581
    %v1585 = vmul.f32 %v1584, %v232
    %v1586 = vtanh.pop %v1585
    %v1587 = vmul.f32 %v1586, %v232
    %v1588 = vadd.f32 %v1587, %v233
    %v1589 = vmul.f32 %v1588, %v1493
    %1591 = vrot.lane.b32.xlu0 %v1588, 64
    %v1592 = vpop.permute.xlu0 %1591
    %v1594 = vmul.f32 %v1588, %v1592
    %1596 = vrot.lane.b32.xlu0 %v1594, 32
    %v1597 = vpop.permute.xlu0 %1596
    %v1599 = vadd.f32 %v1589, %v1597
    %v1600 = vtanh.pop %v1599
    %1602 = vrot.lane.b32.xlu0 %v1600, 64
    %v1603 = vpop.permute.xlu0 %1602
    %v1605 = vmul.f32 %v1588, %v1603
    %1607 = vrot.lane.b32.xlu0 %v1605, 32
    %v1608 = vpop.permute.xlu0 %1607
    %s1610 = scalar_lea.vmem [#allocation3], 96
    %1611 = vst.msk [vmem:[%s1610] sm:$0xff] %vm239, %v1608
    %s1612 = scalar_lea.vmem [#allocation2], 104
    %v1613 = vld [vmem:[%s1612] sm:$0xff]
    %v1614 = vld [vmem:[%s3] sm:$0xff]
    %v1615 = vld [vmem:[%s3 + $0x8] sm:$0xff]
    %v1616 = vld [vmem:[%s3 + $0x10] sm:$0xff]
    %v1617 = vld [vmem:[%s3 + $0x18] sm:$0xff]
    %v1618 = vsel %vm239, %v1608, 0
    %1620 = vmatprep.subr.mxu0 0.0
    %1621 = vmatpush1.msra.mxu0 0.0
    %1622 = vmatprep.subr.mxu0 0.0
    %1623 = vmatpush1.msra.mxu0 0.0
    %1624 = vmatprep.subr.mxu0 0.0
    %1625 = vmatpush1.msra.mxu0 0.0
    %1626 = vmatprep.subr.mxu0 0.0
    %1627 = vmatpush1.msra.mxu0 0.0
    %1628 = vmatprep.subr.mxu0 0.0
    %1629 = vmatpush1.msra.mxu0 0.0
    %1630 = vmatprep.subr.mxu0 0.0
    %1631 = vmatpush1.msra.mxu0 0.0
    %1632 = vmatprep.subr.mxu0 0.0
    %1633 = vmatpush1.msra.mxu0 0.0
    %1634 = vmatprep.subr.mxu0 0.0
    %1635 = vmatpush1.msra.mxu0 0.0
    %1636 = vmatprep.subr.mxu0 0.0
    %1637 = vmatpush1.msra.mxu0 0.0
    %1638 = vmatprep.subr.mxu0 0.0
    %1639 = vmatpush1.msra.mxu0 0.0
    %1640 = vmatprep.subr.mxu0 0.0
    %1641 = vmatpush1.msra.mxu0 0.0
    %1642 = vmatprep.subr.mxu0 0.0
    %1643 = vmatpush1.msra.mxu0 0.0
    %1644 = vmatprep.subr.mxu0 0.0
    %1645 = vmatpush1.msra.mxu0 %v1617
    %1646 = vmatprep.subr.mxu0 0.0
    %1647 = vmatpush1.msra.mxu0 %v1616
    %1648 = vmatprep.subr.mxu0 0.0
    %1649 = vmatpush1.msra.mxu0 %v1615
    %1650 = vmatprep.subr.mxu0 0.0
    %1651 = vmatpush1.msra.mxu0 %v1614
    %1652 = vmatprep.subr.mxu0 0.0
    %1653 = vmatpush2.msra.mxu0 0.0
    %1654 = vmatprep.subr.mxu0 0.0
    %1655 = vmatpush2.msra.mxu0 0.0
    %1656 = vmatprep.subr.mxu0 0.0
    %1657 = vmatpush2.msra.mxu0 0.0
    %1658 = vmatprep.subr.mxu0 0.0
    %1659 = vmatpush2.msra.mxu0 0.0
    %1660 = vmatprep.subr.mxu0 0.0
    %1661 = vmatpush2.msra.mxu0 0.0
    %1662 = vmatprep.subr.mxu0 0.0
    %1663 = vmatpush2.msra.mxu0 0.0
    %1664 = vmatprep.subr.mxu0 0.0
    %1665 = vmatpush2.msra.mxu0 0.0
    %1666 = vmatprep.subr.mxu0 0.0
    %1667 = vmatpush2.msra.mxu0 0.0
    %1668 = vmatprep.subr.mxu0 0.0
    %1669 = vmatpush2.msra.mxu0 0.0
    %1670 = vmatprep.subr.mxu0 0.0
    %1671 = vmatpush2.msra.mxu0 0.0
    %1672 = vmatprep.subr.mxu0 0.0
    %1673 = vmatpush2.msra.mxu0 0.0
    %1674 = vmatprep.subr.mxu0 0.0
    %1675 = vmatpush2.msra.mxu0 0.0
    %1676 = vmatprep.subr.mxu0 0.0
    %1677 = vmatpush2.msra.mxu0 0.0
    %1678 = vmatprep.subr.mxu0 0.0
    %1679 = vmatpush2.msra.mxu0 0.0
    %1680 = vmatprep.subr.mxu0 0.0
    %1681 = vmatpush2.msra.mxu0 0.0
    %1682 = vmatprep.subr.mxu0 0.0
    %1683 = vmatpush2.msra.mxu0 0.0
    %1684 = vmatprep.mubr.f32.mxu0 0.0
    %1685 = vmatmul.mubr.f32.gmra.mxu0 %v1618
    %v1686 = vpop.f32.mrf.mxu0
    %v1687 = vadd.f32 0.0, %v1686
    %v1688 = vpop.f32.mrf.mxu0
    %1689 = vdwg.mxu0
    %v1690 = vadd.f32 %v1613, %v1687
    %v1691 = vmul.f32 %v1690, %v232
    %v1692 = vtanh.pop %v1691
    %v1693 = vmul.f32 %v1692, %v232
    %v1694 = vadd.f32 %v1693, %v233
    %v1695 = vmul.f32 %v1694, %v1599
    %1697 = vrot.lane.b32.xlu0 %v1694, 64
    %v1698 = vpop.permute.xlu0 %1697
    %v1700 = vmul.f32 %v1694, %v1698
    %1702 = vrot.lane.b32.xlu0 %v1700, 32
    %v1703 = vpop.permute.xlu0 %1702
    %v1705 = vadd.f32 %v1695, %v1703
    %v1706 = vtanh.pop %v1705
    %1708 = vrot.lane.b32.xlu0 %v1706, 64
    %v1709 = vpop.permute.xlu0 %1708
    %v1711 = vmul.f32 %v1694, %v1709
    %1713 = vrot.lane.b32.xlu0 %v1711, 32
    %v1714 = vpop.permute.xlu0 %1713
    %s1716 = scalar_lea.vmem [#allocation3], 104
    %1717 = vst.msk [vmem:[%s1716] sm:$0xff] %vm239, %v1714
    %s1718 = scalar_lea.vmem [#allocation2], 112
    %v1719 = vld [vmem:[%s1718] sm:$0xff]
    %v1720 = vld [vmem:[%s3] sm:$0xff]
    %v1721 = vld [vmem:[%s3 + $0x8] sm:$0xff]
    %v1722 = vld [vmem:[%s3 + $0x10] sm:$0xff]
    %v1723 = vld [vmem:[%s3 + $0x18] sm:$0xff]
    %v1724 = vsel %vm239, %v1714, 0
    %1726 = vmatprep.subr.mxu0 0.0
    %1727 = vmatpush1.msra.mxu0 0.0
    %1728 = vmatprep.subr.mxu0 0.0
    %1729 = vmatpush1.msra.mxu0 0.0
    %1730 = vmatprep.subr.mxu0 0.0
    %1731 = vmatpush1.msra.mxu0 0.0
    %1732 = vmatprep.subr.mxu0 0.0
    %1733 = vmatpush1.msra.mxu0 0.0
    %1734 = vmatprep.subr.mxu0 0.0
    %1735 = vmatpush1.msra.mxu0 0.0
    %1736 = vmatprep.subr.mxu0 0.0
    %1737 = vmatpush1.msra.mxu0 0.0
    %1738 = vmatprep.subr.mxu0 0.0
    %1739 = vmatpush1.msra.mxu0 0.0
    %1740 = vmatprep.subr.mxu0 0.0
    %1741 = vmatpush1.msra.mxu0 0.0
    %1742 = vmatprep.subr.mxu0 0.0
    %1743 = vmatpush1.msra.mxu0 0.0
    %1744 = vmatprep.subr.mxu0 0.0
    %1745 = vmatpush1.msra.mxu0 0.0
    %1746 = vmatprep.subr.mxu0 0.0
    %1747 = vmatpush1.msra.mxu0 0.0
    %1748 = vmatprep.subr.mxu0 0.0
    %1749 = vmatpush1.msra.mxu0 0.0
    %1750 = vmatprep.subr.mxu0 0.0
    %1751 = vmatpush1.msra.mxu0 %v1723
    %1752 = vmatprep.subr.mxu0 0.0
    %1753 = vmatpush1.msra.mxu0 %v1722
    %1754 = vmatprep.subr.mxu0 0.0
    %1755 = vmatpush1.msra.mxu0 %v1721
    %1756 = vmatprep.subr.mxu0 0.0
    %1757 = vmatpush1.msra.mxu0 %v1720
    %1758 = vmatprep.subr.mxu0 0.0
    %1759 = vmatpush2.msra.mxu0 0.0
    %1760 = vmatprep.subr.mxu0 0.0
    %1761 = vmatpush2.msra.mxu0 0.0
    %1762 = vmatprep.subr.mxu0 0.0
    %1763 = vmatpush2.msra.mxu0 0.0
    %1764 = vmatprep.subr.mxu0 0.0
    %1765 = vmatpush2.msra.mxu0 0.0
    %1766 = vmatprep.subr.mxu0 0.0
    %1767 = vmatpush2.msra.mxu0 0.0
    %1768 = vmatprep.subr.mxu0 0.0
    %1769 = vmatpush2.msra.mxu0 0.0
    %1770 = vmatprep.subr.mxu0 0.0
    %1771 = vmatpush2.msra.mxu0 0.0
    %1772 = vmatprep.subr.mxu0 0.0
    %1773 = vmatpush2.msra.mxu0 0.0
    %1774 = vmatprep.subr.mxu0 0.0
    %1775 = vmatpush2.msra.mxu0 0.0
    %1776 = vmatprep.subr.mxu0 0.0
    %1777 = vmatpush2.msra.mxu0 0.0
    %1778 = vmatprep.subr.mxu0 0.0
    %1779 = vmatpush2.msra.mxu0 0.0
    %1780 = vmatprep.subr.mxu0 0.0
    %1781 = vmatpush2.msra.mxu0 0.0
    %1782 = vmatprep.subr.mxu0 0.0
    %1783 = vmatpush2.msra.mxu0 0.0
    %1784 = vmatprep.subr.mxu0 0.0
    %1785 = vmatpush2.msra.mxu0 0.0
    %1786 = vmatprep.subr.mxu0 0.0
    %1787 = vmatpush2.msra.mxu0 0.0
    %1788 = vmatprep.subr.mxu0 0.0
    %1789 = vmatpush2.msra.mxu0 0.0
    %1790 = vmatprep.mubr.f32.mxu0 0.0
    %1791 = vmatmul.mubr.f32.gmra.mxu0 %v1724
    %v1792 = vpop.f32.mrf.mxu0
    %v1793 = vadd.f32 0.0, %v1792
    %v1794 = vpop.f32.mrf.mxu0
    %1795 = vdwg.mxu0
    %v1796 = vadd.f32 %v1719, %v1793
    %v1797 = vmul.f32 %v1796, %v232
    %v1798 = vtanh.pop %v1797
    %v1799 = vmul.f32 %v1798, %v232
    %v1800 = vadd.f32 %v1799, %v233
    %v1801 = vmul.f32 %v1800, %v1705
    %1803 = vrot.lane.b32.xlu0 %v1800, 64
    %v1804 = vpop.permute.xlu0 %1803
    %v1806 = vmul.f32 %v1800, %v1804
    %1808 = vrot.lane.b32.xlu0 %v1806, 32
    %v1809 = vpop.permute.xlu0 %1808
    %v1811 = vadd.f32 %v1801, %v1809
    %v1812 = vtanh.pop %v1811
    %1814 = vrot.lane.b32.xlu0 %v1812, 64
    %v1815 = vpop.permute.xlu0 %1814
    %v1817 = vmul.f32 %v1800, %v1815
    %1819 = vrot.lane.b32.xlu0 %v1817, 32
    %v1820 = vpop.permute.xlu0 %1819
    %s1822 = scalar_lea.vmem [#allocation3], 112
    %1823 = vst.msk [vmem:[%s1822] sm:$0xff] %vm239, %v1820
    %s1824 = scalar_lea.vmem [#allocation2], 120
    %v1825 = vld [vmem:[%s1824] sm:$0xff]
    %v1826 = vld [vmem:[%s3] sm:$0xff]
    %v1827 = vld [vmem:[%s3 + $0x8] sm:$0xff]
    %v1828 = vld [vmem:[%s3 + $0x10] sm:$0xff]
    %v1829 = vld [vmem:[%s3 + $0x18] sm:$0xff]
    %v1830 = vsel %vm239, %v1820, 0
    %1832 = vmatprep.subr.mxu0 0.0
    %1833 = vmatpush1.msra.mxu0 0.0
    %1834 = vmatprep.subr.mxu0 0.0
    %1835 = vmatpush1.msra.mxu0 0.0
    %1836 = vmatprep.subr.mxu0 0.0
    %1837 = vmatpush1.msra.mxu0 0.0
    %1838 = vmatprep.subr.mxu0 0.0
    %1839 = vmatpush1.msra.mxu0 0.0
    %1840 = vmatprep.subr.mxu0 0.0
    %1841 = vmatpush1.msra.mxu0 0.0
    %1842 = vmatprep.subr.mxu0 0.0
    %1843 = vmatpush1.msra.mxu0 0.0
    %1844 = vmatprep.subr.mxu0 0.0
    %1845 = vmatpush1.msra.mxu0 0.0
    %1846 = vmatprep.subr.mxu0 0.0
    %1847 = vmatpush1.msra.mxu0 0.0
    %1848 = vmatprep.subr.mxu0 0.0
    %1849 = vmatpush1.msra.mxu0 0.0
    %1850 = vmatprep.subr.mxu0 0.0
    %1851 = vmatpush1.msra.mxu0 0.0
    %1852 = vmatprep.subr.mxu0 0.0
    %1853 = vmatpush1.msra.mxu0 0.0
    %1854 = vmatprep.subr.mxu0 0.0
    %1855 = vmatpush1.msra.mxu0 0.0
    %1856 = vmatprep.subr.mxu0 0.0
    %1857 = vmatpush1.msra.mxu0 %v1829
    %1858 = vmatprep.subr.mxu0 0.0
    %1859 = vmatpush1.msra.mxu0 %v1828
    %1860 = vmatprep.subr.mxu0 0.0
    %1861 = vmatpush1.msra.mxu0 %v1827
    %1862 = vmatprep.subr.mxu0 0.0
    %1863 = vmatpush1.msra.mxu0 %v1826
    %1864 = vmatprep.subr.mxu0 0.0
    %1865 = vmatpush2.msra.mxu0 0.0
    %1866 = vmatprep.subr.mxu0 0.0
    %1867 = vmatpush2.msra.mxu0 0.0
    %1868 = vmatprep.subr.mxu0 0.0
    %1869 = vmatpush2.msra.mxu0 0.0
    %1870 = vmatprep.subr.mxu0 0.0
    %1871 = vmatpush2.msra.mxu0 0.0
    %1872 = vmatprep.subr.mxu0 0.0
    %1873 = vmatpush2.msra.mxu0 0.0
    %1874 = vmatprep.subr.mxu0 0.0
    %1875 = vmatpush2.msra.mxu0 0.0
    %1876 = vmatprep.subr.mxu0 0.0
    %1877 = vmatpush2.msra.mxu0 0.0
    %1878 = vmatprep.subr.mxu0 0.0
    %1879 = vmatpush2.msra.mxu0 0.0
    %1880 = vmatprep.subr.mxu0 0.0
    %1881 = vmatpush2.msra.mxu0 0.0
    %1882 = vmatprep.subr.mxu0 0.0
    %1883 = vmatpush2.msra.mxu0 0.0
    %1884 = vmatprep.subr.mxu0 0.0
    %1885 = vmatpush2.msra.mxu0 0.0
    %1886 = vmatprep.subr.mxu0 0.0
    %1887 = vmatpush2.msra.mxu0 0.0
    %1888 = vmatprep.subr.mxu0 0.0
    %1889 = vmatpush2.msra.mxu0 0.0
    %1890 = vmatprep.subr.mxu0 0.0
    %1891 = vmatpush2.msra.mxu0 0.0
    %1892 = vmatprep.subr.mxu0 0.0
    %1893 = vmatpush2.msra.mxu0 0.0
    %1894 = vmatprep.subr.mxu0 0.0
    %1895 = vmatpush2.msra.mxu0 0.0
    %1896 = vmatprep.mubr.f32.mxu0 0.0
    %1897 = vmatmul.mubr.f32.gmra.mxu0 %v1830
    %v1898 = vpop.f32.mrf.mxu0
    %v1899 = vadd.f32 0.0, %v1898
    %v1900 = vpop.f32.mrf.mxu0
    %1901 = vdwg.mxu0
    %v1902 = vadd.f32 %v1825, %v1899
    %v1903 = vmul.f32 %v1902, %v232
    %v1904 = vtanh.pop %v1903
    %v1905 = vmul.f32 %v1904, %v232
    %v1906 = vadd.f32 %v1905, %v233
    %v1907 = vmul.f32 %v1906, %v1811
    %1909 = vrot.lane.b32.xlu0 %v1906, 64
    %v1910 = vpop.permute.xlu0 %1909
    %v1912 = vmul.f32 %v1906, %v1910
    %1914 = vrot.lane.b32.xlu0 %v1912, 32
    %v1915 = vpop.permute.xlu0 %1914
    %v1917 = vadd.f32 %v1907, %v1915
    %v1918 = vtanh.pop %v1917
    %1920 = vrot.lane.b32.xlu0 %v1918, 64
    %v1921 = vpop.permute.xlu0 %1920
    %v1923 = vmul.f32 %v1906, %v1921
    %1925 = vrot.lane.b32.xlu0 %v1923, 32
    %v1926 = vpop.permute.xlu0 %1925
    %s1928 = scalar_lea.vmem [#allocation3], 120
    %1929 = vst.msk [vmem:[%s1928] sm:$0xff] %vm239, %v1926
    %v1930 = vld [vmem:[%s4] sm:$0xff]
    %v1931 = vld [vmem:[#allocation3] sm:$0xff]
    %v1932 = vld [vmem:[#allocation3 + $0x8] sm:$0xff]
    %v1933 = vld [vmem:[#allocation3 + $0x10] sm:$0xff]
    %v1934 = vld [vmem:[#allocation3 + $0x18] sm:$0xff]
    %v1935 = vld [vmem:[#allocation3 + $0x20] sm:$0xff]
    %v1936 = vld [vmem:[#allocation3 + $0x28] sm:$0xff]
    %v1937 = vld [vmem:[#allocation3 + $0x30] sm:$0xff]
    %v1938 = vld [vmem:[#allocation3 + $0x38] sm:$0xff]
    %v1939 = vld [vmem:[#allocation3 + $0x40] sm:$0xff]
    %v1940 = vld [vmem:[#allocation3 + $0x48] sm:$0xff]
    %v1941 = vld [vmem:[#allocation3 + $0x50] sm:$0xff]
    %v1942 = vld [vmem:[#allocation3 + $0x58] sm:$0xff]
    %v1943 = vld [vmem:[#allocation3 + $0x60] sm:$0xff]
    %v1944 = vld [vmem:[#allocation3 + $0x68] sm:$0xff]
    %v1945 = vld [vmem:[#allocation3 + $0x70] sm:$0xff]
    %v1946 = vld [vmem:[#allocation3 + $0x78] sm:$0xff]
    %1947 = vmatprep.subr.mxu0 0.0
    %1948 = vmatpush1.msra.mxu0 %v1946
    %1949 = vmatprep.subr.mxu0 0.0
    %1950 = vmatpush1.msra.mxu0 %v1945
    %1951 = vmatprep.subr.mxu0 0.0
    %1952 = vmatpush1.msra.mxu0 %v1944
    %1953 = vmatprep.subr.mxu0 0.0
    %1954 = vmatpush1.msra.mxu0 %v1943
    %1955 = vmatprep.subr.mxu0 0.0
    %1956 = vmatpush1.msra.mxu0 %v1942
    %1957 = vmatprep.subr.mxu0 0.0
    %1958 = vmatpush1.msra.mxu0 %v1941
    %1959 = vmatprep.subr.mxu0 0.0
    %1960 = vmatpush1.msra.mxu0 %v1940
    %1961 = vmatprep.subr.mxu0 0.0
    %1962 = vmatpush1.msra.mxu0 %v1939
    %1963 = vmatprep.subr.mxu0 0.0
    %1964 = vmatpush1.msra.mxu0 %v1938
    %1965 = vmatprep.subr.mxu0 0.0
    %1966 = vmatpush1.msra.mxu0 %v1937
    %1967 = vmatprep.subr.mxu0 0.0
    %1968 = vmatpush1.msra.mxu0 %v1936
    %1969 = vmatprep.subr.mxu0 0.0
    %1970 = vmatpush1.msra.mxu0 %v1935
    %1971 = vmatprep.subr.mxu0 0.0
    %1972 = vmatpush1.msra.mxu0 %v1934
    %1973 = vmatprep.subr.mxu0 0.0
    %1974 = vmatpush1.msra.mxu0 %v1933
    %1975 = vmatprep.subr.mxu0 0.0
    %1976 = vmatpush1.msra.mxu0 %v1932
    %1977 = vmatprep.subr.mxu0 0.0
    %1978 = vmatpush1.msra.mxu0 %v1931
    %1979 = vmatprep.subr.mxu0 0.0
    %1980 = vmatpush2.msra.mxu0 0.0
    %1981 = vmatprep.subr.mxu0 0.0
    %1982 = vmatpush2.msra.mxu0 0.0
    %1983 = vmatprep.subr.mxu0 0.0
    %1984 = vmatpush2.msra.mxu0 0.0
    %1985 = vmatprep.subr.mxu0 0.0
    %1986 = vmatpush2.msra.mxu0 0.0
    %1987 = vmatprep.subr.mxu0 0.0
    %1988 = vmatpush2.msra.mxu0 0.0
    %1989 = vmatprep.subr.mxu0 0.0
    %1990 = vmatpush2.msra.mxu0 0.0
    %1991 = vmatprep.subr.mxu0 0.0
    %1992 = vmatpush2.msra.mxu0 0.0
    %1993 = vmatprep.subr.mxu0 0.0
    %1994 = vmatpush2.msra.mxu0 0.0
    %1995 = vmatprep.subr.mxu0 0.0
    %1996 = vmatpush2.msra.mxu0 0.0
    %1997 = vmatprep.subr.mxu0 0.0
    %1998 = vmatpush2.msra.mxu0 0.0
    %1999 = vmatprep.subr.mxu0 0.0
    %2000 = vmatpush2.msra.mxu0 0.0
    %2001 = vmatprep.subr.mxu0 0.0
    %2002 = vmatpush2.msra.mxu0 0.0
    %2003 = vmatprep.subr.mxu0 0.0
    %2004 = vmatpush2.msra.mxu0 0.0
    %2005 = vmatprep.subr.mxu0 0.0
    %2006 = vmatpush2.msra.mxu0 0.0
    %2007 = vmatprep.subr.mxu0 0.0
    %2008 = vmatpush2.msra.mxu0 0.0
    %2009 = vmatprep.subr.mxu0 0.0
    %2010 = vmatpush2.msra.mxu0 0.0
    %2011 = vmatprep.mubr.f32.mxu0 0.0
    %2012 = vmatmul.mubr.f32.gmra.mxu0 %v1930
    %v2013 = vpop.f32.mrf.mxu0
    %v2014 = vadd.f32 0.0, %v2013
    %v2015 = vpop.f32.mrf.mxu0
    %2016 = vdwg.mxu0
    %v2017 = vld [vmem:[%s5] sm:$0xff]
    %v2018 = vld [vmem:[%s5 + $0x8] sm:$0xff]
    %v2019 = vld [vmem:[%s5 + $0x10] sm:$0xff]
    %v2020 = vld [vmem:[%s5 + $0x18] sm:$0xff]
    %v2021 = vld [vmem:[%s6] sm:$0x1]
    %v2023 = vlaneseq
    %v2024 = vshrl.u32 %v2023, 7
    %v2025 = vsub.s32 0, %v2024
    %v2026 = vrot.slane %v2021, %v2025
    %v2029 = vsel %vm239, %v2014, 0
    %2031 = vmatprep.subr.mxu0 0.0
    %2032 = vmatpush1.msra.mxu0 0.0
    %2033 = vmatprep.subr.mxu0 0.0
    %2034 = vmatpush1.msra.mxu0 0.0
    %2035 = vmatprep.subr.mxu0 0.0
    %2036 = vmatpush1.msra.mxu0 0.0
    %2037 = vmatprep.subr.mxu0 0.0
    %2038 = vmatpush1.msra.mxu0 0.0
    %2039 = vmatprep.subr.mxu0 0.0
    %2040 = vmatpush1.msra.mxu0 0.0
    %2041 = vmatprep.subr.mxu0 0.0
    %2042 = vmatpush1.msra.mxu0 0.0
    %2043 = vmatprep.subr.mxu0 0.0
    %2044 = vmatpush1.msra.mxu0 0.0
    %2045 = vmatprep.subr.mxu0 0.0
    %2046 = vmatpush1.msra.mxu0 0.0
    %2047 = vmatprep.subr.mxu0 0.0
    %2048 = vmatpush1.msra.mxu0 0.0
    %2049 = vmatprep.subr.mxu0 0.0
    %2050 = vmatpush1.msra.mxu0 0.0
    %2051 = vmatprep.subr.mxu0 0.0
    %2052 = vmatpush1.msra.mxu0 0.0
    %2053 = vmatprep.subr.mxu0 0.0
    %2054 = vmatpush1.msra.mxu0 0.0
    %2055 = vmatprep.subr.mxu0 0.0
    %2056 = vmatpush1.msra.mxu0 %v2020
    %2057 = vmatprep.subr.mxu0 0.0
    %2058 = vmatpush1.msra.mxu0 %v2019
    %2059 = vmatprep.subr.mxu0 0.0
    %2060 = vmatpush1.msra.mxu0 %v2018
    %2061 = vmatprep.subr.mxu0 0.0
    %2062 = vmatpush1.msra.mxu0 %v2017
    %2063 = vmatprep.subr.mxu0 0.0
    %2064 = vmatpush2.msra.mxu0 0.0
    %2065 = vmatprep.subr.mxu0 0.0
    %2066 = vmatpush2.msra.mxu0 0.0
    %2067 = vmatprep.subr.mxu0 0.0
    %2068 = vmatpush2.msra.mxu0 0.0
    %2069 = vmatprep.subr.mxu0 0.0
    %2070 = vmatpush2.msra.mxu0 0.0
    %2071 = vmatprep.subr.mxu0 0.0
    %2072 = vmatpush2.msra.mxu0 0.0
    %2073 = vmatprep.subr.mxu0 0.0
    %2074 = vmatpush2.msra.mxu0 0.0
    %2075 = vmatprep.subr.mxu0 0.0
    %2076 = vmatpush2.msra.mxu0 0.0
    %2077 = vmatprep.subr.mxu0 0.0
    %2078 = vmatpush2.msra.mxu0 0.0
    %2079 = vmatprep.subr.mxu0 0.0
    %2080 = vmatpush2.msra.mxu0 0.0
    %2081 = vmatprep.subr.mxu0 0.0
    %2082 = vmatpush2.msra.mxu0 0.0
    %2083 = vmatprep.subr.mxu0 0.0
    %2084 = vmatpush2.msra.mxu0 0.0
    %2085 = vmatprep.subr.mxu0 0.0
    %2086 = vmatpush2.msra.mxu0 0.0
    %2087 = vmatprep.subr.mxu0 0.0
    %2088 = vmatpush2.msra.mxu0 0.0
    %2089 = vmatprep.subr.mxu0 0.0
    %2090 = vmatpush2.msra.mxu0 0.0
    %2091 = vmatprep.subr.mxu0 0.0
    %2092 = vmatpush2.msra.mxu0 0.0
    %2093 = vmatprep.subr.mxu0 0.0
    %2094 = vmatpush2.msra.mxu0 0.0
    %2095 = vmatprep.mubr.f32.mxu0 0.0
    %2096 = vmatmul.mubr.f32.gmra.mxu0 %v2029
    %v2097 = vpop.f32.mrf.mxu0
    %v2098 = vadd.f32 %v2026, %v2097
    %v2099 = vpop.f32.mrf.mxu0
    %2100 = vdwg.mxu0
    %vm2101 = vcmask 162816
    %v2102 = vsel %vm2101, %v2098, -inf
    %2103 = vmax.xlane.f32.xlu0 %v2102
    %v2104 = vpop.xlane.xlu0 %2103
    %v2105 = vsub.f32 %v2098, %v2104
    %v2106 = vmul.f32 %v2105, 1.442695
    %v2107 = vpow.pop %v2106
    %v2108 = vsel %vm2101, %v2107, 0.0
    %2109 = vadd.xlane.f32.xlu0 %v2108
    %v2110 = vpop.xlane.xlu0 %2109
    %v2111 = vlog2.pop %v2110
    %v2112 = vmul.f32 %v2111, 0.6931472
    %v2113 = vsub.f32 %v2105, %v2112
    %2114 = vst.msk [vmem:[#allocation4] sm:$0xff] %vm2101, %v2113
    // Predicated region
    $region30: #{lstm_classifier_forward.1} parent=1 // pred_check
      _
    $region31: #{lstm_classifier_forward.1} parent=1 // pred_check_branch
      %2116 = sbr.rel (0) target = $region33
    $region32: #{lstm_classifier_forward.1} parent=1 // pred_region
      %s2118 = ssub.s32 128, 128
      %2119 = vsyncadd [#allocation5], %s2118
      %s2121 = sshll.u32 [#allocation4], 4
      %s2122 = int_to_ptr.vmem [resolvable:$true] %s2121
      %2124 = dma.vmem_to_hbm [thread:$0]  %s2122, 128, %s7, [#allocation5]
    $region33: #{lstm_classifier_forward.1} parent=1 // pred_fallthru
      _
    // Predicated region
    $region34: #{lstm_classifier_forward.1} parent=1 // pred_check
      _
    $region35: #{lstm_classifier_forward.1} parent=1 // pred_check_branch
      %2126 = sbr.rel (0) target = $region37
    $region36: #{lstm_classifier_forward.1} parent=1 // pred_region
      %2127 = dma.done [#allocation5], 128
    $region37: #{lstm_classifier_forward.1} parent=1 // pred_fallthru
      _
    %2128 = vsyncpa [#allocation5], 1

</llo_original>
